<compile_context>
chip_gen: v7x
topology: tpu7x:2x2x1
jax: 0.10.0
libtpu: 0.0.40
codegen_flags: <defaults>
</compile_context>

<pallas_src>
import functools

import jax
import jax.numpy as jnp
from jax import lax
from jax.experimental import pallas as pl
from jax.experimental.pallas import tpu as pltpu

_EPS = 1e-5
_VMEM_LIMIT = 32 * 1024 * 1024  # fits scoped-VMEM defaults on v5e/v6e/v7x


# ---------------------------------------------------------------------------
# Kernels
# ---------------------------------------------------------------------------
def _conv3x3_kernel(x_ref, m_ref, scale_ref, shift_ref, y_ref, stats_ref,
                    *, cin, apply_relu):
    """One grid step = one batch sample, lane-dense (row, W*C) layout.

    x_ref     : (1, H, W*Cin)          raw (pre-BN) activations
    m_ref     : (3, (W+2)*Cin, W*Cout) banded per-dy weight matrices (bf16)
    scale_ref : (1, W*Cin)             input-side BN scale (identity for conv1)
    shift_ref : (1, W*Cin)             input-side BN shift
    y_ref     : (1, H, W*Cout)         raw conv output (pre-BN), f32
    stats_ref : (1, 2, W*Cout)         per-sample [sum(y), sum(y*y)] over rows
    """
    H = x_ref.shape[1]
    kp = m_ref.shape[1]        # (W+2)*Cin
    wcout = m_ref.shape[2]     # W*Cout

    # Input-side BN affine (+ ReLU) fused here; element-wise math in f32.
    v = x_ref[0].astype(jnp.float32) * scale_ref[...] + shift_ref[...]
    if apply_relu:
        v = jnp.maximum(v, 0.0)

    # Zero-pad W (Cin lanes each side) and H (one row each side) in-register;
    # no padded-intermediate scratch round trip through VMEM.
    zc = jnp.zeros((H, cin), jnp.float32)
    vp = jnp.concatenate([zc, v, zc], axis=-1)      # (H, (W+2)*Cin)
    zr = jnp.zeros((1, kp), jnp.float32)
    xp = jnp.concatenate([zr, vp, zr], axis=0)      # (H+2, (W+2)*Cin)
    xp = xp.astype(jnp.bfloat16)                    # bf16 MXU operands

    # 3x3 conv as 3 matmuls (one per dy): K = (W+2)*Cin, N = W*Cout (lane dense),
    # f32 accumulation on the MXU.
    acc = jnp.zeros((H, wcout), jnp.float32)
    for dy in range(3):
        acc += jnp.dot(xp[dy:dy + H, :], m_ref[dy],
                       preferred_element_type=jnp.float32)

    y_ref[0] = acc
    # Single-pass BN statistics fused into the conv epilogue.
    ssum = jnp.sum(acc, axis=0, keepdims=True)
    ssq = jnp.sum(acc * acc, axis=0, keepdims=True)
    stats_ref[0] = jnp.concatenate([ssum, ssq], axis=0)


def _bn_relu_kernel(y_ref, scale_ref, shift_ref, o_ref):
    """Final BN (folded into scale/shift) + ReLU on the last conv's raw output."""
    o_ref[0] = jnp.maximum(y_ref[0] * scale_ref[...] + shift_ref[...], 0.0)


# ---------------------------------------------------------------------------
# Wrappers
# ---------------------------------------------------------------------------
def _banded_weights(wt, W):
    """torch (Cout, Cin, 3, 3) conv weight -> (3, (W+2)*Cin, W*Cout) banded bf16 mats.

    M[dy][(w+dx)*Cin + ci, w*Cout + co] = wt[co, ci, dy, dx]  (else 0).
    """
    cout, cin = wt.shape[0], wt.shape[1]
    mats = []
    for dy in range(3):
        m = jnp.zeros(((W + 2) * cin, W * cout), jnp.float32)
        for dx in range(3):
            shift = jnp.eye(W + 2, W, k=-dx, dtype=jnp.float32)  # [wx, w]=1 iff wx==w+dx
            m = m + jnp.kron(shift, wt[:, :, dy, dx].T)
        mats.append(m)
    return jnp.stack(mats).astype(jnp.bfloat16)


def _conv_call(x_packed, m, scale, shift, *, cin, apply_relu):
    n, H, wcin = x_packed.shape
    wcout = m.shape[2]
    kernel = functools.partial(_conv3x3_kernel, cin=cin, apply_relu=apply_relu)
    return pl.pallas_call(
        kernel,
        grid=(n,),
        in_specs=[
            pl.BlockSpec((1, H, wcin), lambda i: (i, 0, 0)),
            pl.BlockSpec(m.shape, lambda i: (0, 0, 0)),
            pl.BlockSpec((1, wcin), lambda i: (0, 0)),
            pl.BlockSpec((1, wcin), lambda i: (0, 0)),
        ],
        out_specs=[
            pl.BlockSpec((1, H, wcout), lambda i: (i, 0, 0)),
            pl.BlockSpec((1, 2, wcout), lambda i: (i, 0, 0)),
        ],
        out_shape=[
            jax.ShapeDtypeStruct((n, H, wcout), jnp.float32),
            jax.ShapeDtypeStruct((n, 2, wcout), jnp.float32),
        ],
        compiler_params=pltpu.CompilerParams(
            dimension_semantics=("parallel",),   # shard batch across v7x's 2 TCs
            vmem_limit_bytes=_VMEM_LIMIT),
    )(x_packed, m, scale, shift)


def _bn_relu_call(y_raw, scale, shift):
    n, H, wc = y_raw.shape
    return pl.pallas_call(
        _bn_relu_kernel,
        grid=(n,),
        in_specs=[
            pl.BlockSpec((1, H, wc), lambda i: (i, 0, 0)),
            pl.BlockSpec((1, wc), lambda i: (0, 0)),
            pl.BlockSpec((1, wc), lambda i: (0, 0)),
        ],
        out_specs=pl.BlockSpec((1, H, wc), lambda i: (i, 0, 0)),
        out_shape=jax.ShapeDtypeStruct((n, H, wc), jnp.float32),
        compiler_params=pltpu.CompilerParams(
            dimension_semantics=("parallel",),
            vmem_limit_bytes=_VMEM_LIMIT),
    )(y_raw, scale, shift)


def _finalize_bn(stats, gamma, beta, count, W):
    """Reduce per-tile partial sums across the grid and fold BN into scale/shift,
    broadcast to the packed (W*C) lane layout."""
    c = gamma.shape[0]
    s = jnp.sum(stats, axis=0)                 # (2, W*C): sum over batch tiles
    s = s.reshape(2, W, c).sum(axis=1)         # (2, C)  : sum over W positions
    mean = s[0] / count
    var = s[1] / count - mean * mean           # E[x^2] - mean^2 (single-pass stats)
    scale_c = gamma * lax.rsqrt(var + _EPS)
    shift_c = beta - mean * scale_c            # conv bias cancels against the mean
    scale = jnp.tile(scale_c, W).reshape(1, W * c)
    shift = jnp.tile(shift_c, W).reshape(1, W * c)
    return scale, shift


def conv_block_forward(x_nchw, params):
    """convTwice forward: (N, Cin, H, W) f32 -> (N, Cout, H, W) f32."""
    n, cin, H, W = x_nchw.shape
    cout = params["w1"].shape[0]

    # Lane-dense packing: NCHW -> (N, H, W*C), channels fastest in the lane axis.
    x_packed = jnp.transpose(x_nchw, (0, 2, 3, 1)).reshape(n, H, W * cin)
    x_packed = x_packed.astype(jnp.float32)

    m1 = _banded_weights(params["w1"], W)
    m2 = _banded_weights(params["w2"], W)

    one = jnp.ones((1, W * cin), jnp.float32)
    zero = jnp.zeros((1, W * cin), jnp.float32)

    # conv1 (raw) + fused per-sample stats.  Biases b1/b2 are intentionally unused:
    # training-mode BN subtracts the batch mean, which cancels them exactly.
    y1_raw, s1 = _conv_call(x_packed, m1, one, zero, cin=cin, apply_relu=False)
    scale1, shift1 = _finalize_bn(s1, params["g1"], params["be1"], n * H * W, W)

    # conv2 with BN1 + ReLU fused onto its input side.
    y2_raw, s2 = _conv_call(y1_raw, m2, scale1, shift1, cin=cout, apply_relu=True)
    scale2, shift2 = _finalize_bn(s2, params["g2"], params["be2"], n * H * W, W)

    out_packed = _bn_relu_call(y2_raw, scale2, shift2)
    return jnp.transpose(out_packed.reshape(n, H, W, cout), (0, 3, 1, 2))


# ---------------------------------------------------------------------------
# Reference + demo
# ---------------------------------------------------------------------------
def _ref_forward(x_nchw, p, matmul_dtype=jnp.float32):
    """Plain-JAX reference with PyTorch training-mode forward semantics.
    matmul_dtype=bfloat16 reproduces the kernel's MXU operand precision."""
    def conv(x, w, b):
        y = lax.conv_general_dilated(
            x.astype(matmul_dtype), w.astype(matmul_dtype),
            window_strides=(1, 1), padding=((1, 1), (1, 1)),
            dimension_numbers=("NCHW", "OIHW", "NCHW"),
            preferred_element_type=jnp.float32)
        return y + b.reshape(1, -1, 1, 1)

    def bn_relu(x, g, be):
        m = jnp.mean(x, axis=(0, 2, 3), keepdims=True)
        v = jnp.mean((x - m) ** 2, axis=(0, 2, 3), keepdims=True)
        y = (x - m) * lax.rsqrt(v + _EPS) * g.reshape(1, -1, 1, 1) \
            + be.reshape(1, -1, 1, 1)
        return jnp.maximum(y, 0.0)

    y = bn_relu(conv(x_nchw, p["w1"], p["b1"]), p["g1"], p["be1"])
    return bn_relu(conv(y, p["w2"], p["b2"]), p["g2"], p["be2"])


def _init_params(key, ch_in, ch_out):
    ks = jax.random.split(key, 8)
    s1 = 1.0 / (ch_in * 9) ** 0.5
    s2 = 1.0 / (ch_out * 9) ** 0.5
    return {
        "w1": jax.random.uniform(ks[0], (ch_out, ch_in, 3, 3), jnp.float32, -s1, s1),
        "b1": jax.random.uniform(ks[1], (ch_out,), jnp.float32, -s1, s1),
        "g1": 1.0 + 0.1 * jax.random.normal(ks[2], (ch_out,), jnp.float32),
        "be1": 0.1 * jax.random.normal(ks[3], (ch_out,), jnp.float32),
        "w2": jax.random.uniform(ks[4], (ch_out, ch_out, 3, 3), jnp.float32, -s2, s2),
        "b2": jax.random.uniform(ks[5], (ch_out,), jnp.float32, -s2, s2),
        "g2": 1.0 + 0.1 * jax.random.normal(ks[6], (ch_out,), jnp.float32),
        "be2": 0.1 * jax.random.normal(ks[7], (ch_out,), jnp.float32),
    }


if __name__ == "__main__":
    N, CH_IN, CH_OUT, H, W = 2, 4, 8, 16, 16
    key = jax.random.PRNGKey(0)
    k_x, k_p = jax.random.split(key)

    x = jax.random.normal(k_x, (N, CH_IN, H, W), jnp.float32)
    params = _init_params(k_p, CH_IN, CH_OUT)

    fwd = jax.jit(conv_block_forward)
    out = jax.block_until_ready(fwd(x, params))
    assert out.shape == (N, CH_OUT, H, W)

    # Strict check against a reference with matching (bf16) MXU operand precision.
    ref_bf16 = _ref_forward(x, params, jnp.bfloat16)
    assert jnp.allclose(out, ref_bf16, atol=2e-3, rtol=2e-3)

    # Loose sanity check against the full-f32 PyTorch-semantics reference
    # (difference is only the bf16 matmul operands).
    ref_f32 = _ref_forward(x, params, jnp.float32)
    assert jnp.allclose(out, ref_f32, atol=1e-1, rtol=1e-1)

    print("KERNEL_OK")
</pallas_src>

<mosaic_0001>
module attributes {stable_mosaic.version = 11 : i64} {
  func.func @_conv3x3_kernel(%arg0: i32, %arg1: memref<1x16x64xf32, #tpu.memory_space<vmem>>, %arg2: memref<3x72x128xbf16, #tpu.memory_space<vmem>>, %arg3: memref<1x64xf32, #tpu.memory_space<vmem>>, %arg4: memref<1x64xf32, #tpu.memory_space<vmem>>, %arg5: memref<1x16x128xf32, #tpu.memory_space<vmem>>, %arg6: memref<1x2x128xf32, #tpu.memory_space<vmem>>) attributes {dimension_semantics = [#tpu.dimension_semantics<parallel>], iteration_bounds = array<i64: 2>, scalar_prefetch = 0 : i64, scratch_operands = 0 : i64, tpu.core_type = #tpu.core_type<tc>, window_params = [{transform_indices = @transform_0, window_bounds = array<i64: 1, 16, 64>}, {pipeline_mode = #tpu.pipeline_mode<synchronous>, transform_indices = @transform_1, window_bounds = array<i64: 3, 72, 128>}, {pipeline_mode = #tpu.pipeline_mode<synchronous>, transform_indices = @transform_2, window_bounds = array<i64: 1, 64>}, {pipeline_mode = #tpu.pipeline_mode<synchronous>, transform_indices = @transform_3, window_bounds = array<i64: 1, 64>}, {transform_indices = @transform_4, window_bounds = array<i64: 1, 16, 128>}, {transform_indices = @transform_5, window_bounds = array<i64: 1, 2, 128>}]} {
    %c0 = arith.constant 0 : index
    %c0_0 = arith.constant 0 : index
    %c0_1 = arith.constant 0 : index
    %0 = vector.load %arg1[%c0, %c0_0, %c0_1] : memref<1x16x64xf32, #tpu.memory_space<vmem>>, vector<1x16x64xf32>
    %1 = vector.shape_cast %0 : vector<1x16x64xf32> to vector<16x64xf32>
    %c0_2 = arith.constant 0 : index
    %c0_3 = arith.constant 0 : index
    %2 = vector.load %arg3[%c0_2, %c0_3] : memref<1x64xf32, #tpu.memory_space<vmem>>, vector<1x64xf32>
    %3 = vector.broadcast %2 : vector<1x64xf32> to vector<16x64xf32>
    %4 = arith.mulf %1, %3 : vector<16x64xf32>
    %c0_4 = arith.constant 0 : index
    %c0_5 = arith.constant 0 : index
    %5 = vector.load %arg4[%c0_4, %c0_5] : memref<1x64xf32, #tpu.memory_space<vmem>>, vector<1x64xf32>
    %6 = vector.broadcast %5 : vector<1x64xf32> to vector<16x64xf32>
    %7 = arith.addf %4, %6 : vector<16x64xf32>
    %cst = arith.constant 0.000000e+00 : f32
    %8 = vector.broadcast %cst : f32 to vector<16x4xf32>
    %9 = tpu.concatenate %8, %7, %8 in 1 : vector<16x4xf32>, vector<16x64xf32>, vector<16x4xf32> -> vector<16x72xf32>
    %cst_6 = arith.constant 0.000000e+00 : f32
    %10 = vector.broadcast %cst_6 : f32 to vector<1x72xf32>
    %11 = tpu.concatenate %10, %9, %10 in 0 : vector<1x72xf32>, vector<16x72xf32>, vector<1x72xf32> -> vector<18x72xf32>
    %12 = arith.truncf %11 : vector<18x72xf32> to vector<18x72xbf16>
    %cst_7 = arith.constant 0.000000e+00 : f32
    %13 = vector.broadcast %cst_7 : f32 to vector<16x128xf32>
    %14 = vector.extract_strided_slice %12 {offsets = [0, 0], sizes = [16, 72], strides = [1, 1]} : vector<18x72xbf16> to vector<16x72xbf16>
    %c0_8 = arith.constant 0 : index
    %c0_9 = arith.constant 0 : index
    %c0_10 = arith.constant 0 : index
    %15 = vector.load %arg2[%c0_8, %c0_9, %c0_10] : memref<3x72x128xbf16, #tpu.memory_space<vmem>>, vector<1x72x128xbf16>
    %16 = vector.shape_cast %15 : vector<1x72x128xbf16> to vector<72x128xbf16>
    %cst_11 = arith.constant dense<0.000000e+00> : vector<16x128xf32>
    %17 = tpu.matmul %14, %16, %cst_11 {dimension_numbers = #tpu.dot_dimension_numbers<[1], [0], [0], [1], [0, 0, 1, 1], [], []>} : vector<16x72xbf16>, vector<72x128xbf16>, vector<16x128xf32> -> vector<16x128xf32>
    %18 = arith.addf %13, %17 : vector<16x128xf32>
    %19 = vector.extract_strided_slice %12 {offsets = [1, 0], sizes = [16, 72], strides = [1, 1]} : vector<18x72xbf16> to vector<16x72xbf16>
    %c1 = arith.constant 1 : index
    %c0_12 = arith.constant 0 : index
    %c0_13 = arith.constant 0 : index
    %20 = vector.load %arg2[%c1, %c0_12, %c0_13] : memref<3x72x128xbf16, #tpu.memory_space<vmem>>, vector<1x72x128xbf16>
    %21 = vector.shape_cast %20 : vector<1x72x128xbf16> to vector<72x128xbf16>
    %cst_14 = arith.constant dense<0.000000e+00> : vector<16x128xf32>
    %22 = tpu.matmul %19, %21, %cst_14 {dimension_numbers = #tpu.dot_dimension_numbers<[1], [0], [0], [1], [0, 0, 1, 1], [], []>} : vector<16x72xbf16>, vector<72x128xbf16>, vector<16x128xf32> -> vector<16x128xf32>
    %23 = arith.addf %18, %22 : vector<16x128xf32>
    %24 = vector.extract_strided_slice %12 {offsets = [2, 0], sizes = [16, 72], strides = [1, 1]} : vector<18x72xbf16> to vector<16x72xbf16>
    %c2 = arith.constant 2 : index
    %c0_15 = arith.constant 0 : index
    %c0_16 = arith.constant 0 : index
    %25 = vector.load %arg2[%c2, %c0_15, %c0_16] : memref<3x72x128xbf16, #tpu.memory_space<vmem>>, vector<1x72x128xbf16>
    %26 = vector.shape_cast %25 : vector<1x72x128xbf16> to vector<72x128xbf16>
    %cst_17 = arith.constant dense<0.000000e+00> : vector<16x128xf32>
    %27 = tpu.matmul %24, %26, %cst_17 {dimension_numbers = #tpu.dot_dimension_numbers<[1], [0], [0], [1], [0, 0, 1, 1], [], []>} : vector<16x72xbf16>, vector<72x128xbf16>, vector<16x128xf32> -> vector<16x128xf32>
    %28 = arith.addf %23, %27 : vector<16x128xf32>
    %c0_18 = arith.constant 0 : index
    %c0_19 = arith.constant 0 : index
    %c0_20 = arith.constant 0 : index
    %29 = vector.load %arg5[%c0_18, %c0_19, %c0_20] : memref<1x16x128xf32, #tpu.memory_space<vmem>>, vector<1x16x128xf32>
    %30 = vector.shape_cast %29 : vector<1x16x128xf32> to vector<16x128xf32>
    %31 = vector.shape_cast %28 : vector<16x128xf32> to vector<1x16x128xf32>
    tpu.vector_store %arg5[%c0_18, %c0_19, %c0_20], %31 {strides = array<i32>} : memref<1x16x128xf32, #tpu.memory_space<vmem>>, vector<1x16x128xf32>,
    %cst_21 = arith.constant dense<0.000000e+00> : vector<128xf32>
    %32 = vector.multi_reduction <add>, %28, %cst_21 [0] : vector<16x128xf32> to vector<128xf32>
    %33 = vector.shape_cast %32 : vector<128xf32> to vector<1x128xf32>
    %34 = arith.mulf %28, %28 : vector<16x128xf32>
    %cst_22 = arith.constant dense<0.000000e+00> : vector<128xf32>
    %35 = vector.multi_reduction <add>, %34, %cst_22 [0] : vector<16x128xf32> to vector<128xf32>
    %36 = vector.shape_cast %35 : vector<128xf32> to vector<1x128xf32>
    %37 = tpu.concatenate %33, %36 in 0 : vector<1x128xf32>, vector<1x128xf32> -> vector<2x128xf32>
    %c0_23 = arith.constant 0 : index
    %c0_24 = arith.constant 0 : index
    %c0_25 = arith.constant 0 : index
    %38 = vector.load %arg6[%c0_23, %c0_24, %c0_25] : memref<1x2x128xf32, #tpu.memory_space<vmem>>, vector<1x2x128xf32>
    %39 = vector.shape_cast %38 : vector<1x2x128xf32> to vector<2x128xf32>
    %40 = vector.shape_cast %37 : vector<2x128xf32> to vector<1x2x128xf32>
    tpu.vector_store %arg6[%c0_23, %c0_24, %c0_25], %40 {strides = array<i32>} : memref<1x2x128xf32, #tpu.memory_space<vmem>>, vector<1x2x128xf32>,
    return
  }
  func.func @transform_0(%arg0: i32) -> (i32, i32, i32) {
    %c0_i32 = arith.constant 0 : i32
    %c0_i32_0 = arith.constant 0 : i32
    %c0_i32_1 = arith.constant 0 : i32
    return %arg0, %c0_i32, %c0_i32_0 : i32, i32, i32
  }
  func.func @transform_1(%arg0: i32) -> (i32, i32, i32) {
    %c0_i32 = arith.constant 0 : i32
    %c0_i32_0 = arith.constant 0 : i32
    %c0_i32_1 = arith.constant 0 : i32
    %c0_i32_2 = arith.constant 0 : i32
    return %c0_i32, %c0_i32_0, %c0_i32_1 : i32, i32, i32
  }
  func.func @transform_2(%arg0: i32) -> (i32, i32) {
    %c0_i32 = arith.constant 0 : i32
    %c0_i32_0 = arith.constant 0 : i32
    %c0_i32_1 = arith.constant 0 : i32
    return %c0_i32, %c0_i32_0 : i32, i32
  }
  func.func @transform_3(%arg0: i32) -> (i32, i32) {
    %c0_i32 = arith.constant 0 : i32
    %c0_i32_0 = arith.constant 0 : i32
    %c0_i32_1 = arith.constant 0 : i32
    return %c0_i32, %c0_i32_0 : i32, i32
  }
  func.func @transform_4(%arg0: i32) -> (i32, i32, i32) {
    %c0_i32 = arith.constant 0 : i32
    %c0_i32_0 = arith.constant 0 : i32
    %c0_i32_1 = arith.constant 0 : i32
    return %arg0, %c0_i32, %c0_i32_0 : i32, i32, i32
  }
  func.func @transform_5(%arg0: i32) -> (i32, i32, i32) {
    %c0_i32 = arith.constant 0 : i32
    %c0_i32_0 = arith.constant 0 : i32
    %c0_i32_1 = arith.constant 0 : i32
    return %arg0, %c0_i32, %c0_i32_0 : i32, i32, i32
  }
}

module attributes {stable_mosaic.version = 11 : i64} {
  func.func @_conv3x3_kernel(%arg0: i32, %arg1: memref<1x16x128xf32, #tpu.memory_space<vmem>>, %arg2: memref<3x144x128xbf16, #tpu.memory_space<vmem>>, %arg3: memref<1x128xf32, #tpu.memory_space<vmem>>, %arg4: memref<1x128xf32, #tpu.memory_space<vmem>>, %arg5: memref<1x16x128xf32, #tpu.memory_space<vmem>>, %arg6: memref<1x2x128xf32, #tpu.memory_space<vmem>>) attributes {dimension_semantics = [#tpu.dimension_semantics<parallel>], iteration_bounds = array<i64: 2>, scalar_prefetch = 0 : i64, scratch_operands = 0 : i64, tpu.core_type = #tpu.core_type<tc>, window_params = [{transform_indices = @transform_0, window_bounds = array<i64: 1, 16, 128>}, {pipeline_mode = #tpu.pipeline_mode<synchronous>, transform_indices = @transform_1, window_bounds = array<i64: 3, 144, 128>}, {pipeline_mode = #tpu.pipeline_mode<synchronous>, transform_indices = @transform_2, window_bounds = array<i64: 1, 128>}, {pipeline_mode = #tpu.pipeline_mode<synchronous>, transform_indices = @transform_3, window_bounds = array<i64: 1, 128>}, {transform_indices = @transform_4, window_bounds = array<i64: 1, 16, 128>}, {transform_indices = @transform_5, window_bounds = array<i64: 1, 2, 128>}]} {
    %c0 = arith.constant 0 : index
    %c0_0 = arith.constant 0 : index
    %c0_1 = arith.constant 0 : index
    %0 = vector.load %arg1[%c0, %c0_0, %c0_1] : memref<1x16x128xf32, #tpu.memory_space<vmem>>, vector<1x16x128xf32>
    %1 = vector.shape_cast %0 : vector<1x16x128xf32> to vector<16x128xf32>
    %c0_2 = arith.constant 0 : index
    %c0_3 = arith.constant 0 : index
    %2 = vector.load %arg3[%c0_2, %c0_3] : memref<1x128xf32, #tpu.memory_space<vmem>>, vector<1x128xf32>
    %3 = vector.broadcast %2 : vector<1x128xf32> to vector<16x128xf32>
    %4 = arith.mulf %1, %3 : vector<16x128xf32>
    %c0_4 = arith.constant 0 : index
    %c0_5 = arith.constant 0 : index
    %5 = vector.load %arg4[%c0_4, %c0_5] : memref<1x128xf32, #tpu.memory_space<vmem>>, vector<1x128xf32>
    %6 = vector.broadcast %5 : vector<1x128xf32> to vector<16x128xf32>
    %7 = arith.addf %4, %6 : vector<16x128xf32>
    %cst = arith.constant 0.000000e+00 : f32
    %8 = vector.broadcast %cst : f32 to vector<16x128xf32>
    %9 = arith.maximumf %7, %8 : vector<16x128xf32>
    %cst_6 = arith.constant 0.000000e+00 : f32
    %10 = vector.broadcast %cst_6 : f32 to vector<16x8xf32>
    %11 = tpu.concatenate %10, %9, %10 in 1 : vector<16x8xf32>, vector<16x128xf32>, vector<16x8xf32> -> vector<16x144xf32>
    %cst_7 = arith.constant 0.000000e+00 : f32
    %12 = vector.broadcast %cst_7 : f32 to vector<1x144xf32>
    %13 = tpu.concatenate %12, %11, %12 in 0 : vector<1x144xf32>, vector<16x144xf32>, vector<1x144xf32> -> vector<18x144xf32>
    %14 = arith.truncf %13 : vector<18x144xf32> to vector<18x144xbf16>
    %cst_8 = arith.constant 0.000000e+00 : f32
    %15 = vector.broadcast %cst_8 : f32 to vector<16x128xf32>
    %16 = vector.extract_strided_slice %14 {offsets = [0, 0], sizes = [16, 144], strides = [1, 1]} : vector<18x144xbf16> to vector<16x144xbf16>
    %c0_9 = arith.constant 0 : index
    %c0_10 = arith.constant 0 : index
    %c0_11 = arith.constant 0 : index
    %17 = vector.load %arg2[%c0_9, %c0_10, %c0_11] : memref<3x144x128xbf16, #tpu.memory_space<vmem>>, vector<1x144x128xbf16>
    %18 = vector.shape_cast %17 : vector<1x144x128xbf16> to vector<144x128xbf16>
    %cst_12 = arith.constant dense<0.000000e+00> : vector<16x128xf32>
    %19 = tpu.matmul %16, %18, %cst_12 {dimension_numbers = #tpu.dot_dimension_numbers<[1], [0], [0], [1], [0, 0, 1, 1], [], []>} : vector<16x144xbf16>, vector<144x128xbf16>, vector<16x128xf32> -> vector<16x128xf32>
    %20 = arith.addf %15, %19 : vector<16x128xf32>
    %21 = vector.extract_strided_slice %14 {offsets = [1, 0], sizes = [16, 144], strides = [1, 1]} : vector<18x144xbf16> to vector<16x144xbf16>
    %c1 = arith.constant 1 : index
    %c0_13 = arith.constant 0 : index
    %c0_14 = arith.constant 0 : index
    %22 = vector.load %arg2[%c1, %c0_13, %c0_14] : memref<3x144x128xbf16, #tpu.memory_space<vmem>>, vector<1x144x128xbf16>
    %23 = vector.shape_cast %22 : vector<1x144x128xbf16> to vector<144x128xbf16>
    %cst_15 = arith.constant dense<0.000000e+00> : vector<16x128xf32>
    %24 = tpu.matmul %21, %23, %cst_15 {dimension_numbers = #tpu.dot_dimension_numbers<[1], [0], [0], [1], [0, 0, 1, 1], [], []>} : vector<16x144xbf16>, vector<144x128xbf16>, vector<16x128xf32> -> vector<16x128xf32>
    %25 = arith.addf %20, %24 : vector<16x128xf32>
    %26 = vector.extract_strided_slice %14 {offsets = [2, 0], sizes = [16, 144], strides = [1, 1]} : vector<18x144xbf16> to vector<16x144xbf16>
    %c2 = arith.constant 2 : index
    %c0_16 = arith.constant 0 : index
    %c0_17 = arith.constant 0 : index
    %27 = vector.load %arg2[%c2, %c0_16, %c0_17] : memref<3x144x128xbf16, #tpu.memory_space<vmem>>, vector<1x144x128xbf16>
    %28 = vector.shape_cast %27 : vector<1x144x128xbf16> to vector<144x128xbf16>
    %cst_18 = arith.constant dense<0.000000e+00> : vector<16x128xf32>
    %29 = tpu.matmul %26, %28, %cst_18 {dimension_numbers = #tpu.dot_dimension_numbers<[1], [0], [0], [1], [0, 0, 1, 1], [], []>} : vector<16x144xbf16>, vector<144x128xbf16>, vector<16x128xf32> -> vector<16x128xf32>
    %30 = arith.addf %25, %29 : vector<16x128xf32>
    %c0_19 = arith.constant 0 : index
    %c0_20 = arith.constant 0 : index
    %c0_21 = arith.constant 0 : index
    %31 = vector.load %arg5[%c0_19, %c0_20, %c0_21] : memref<1x16x128xf32, #tpu.memory_space<vmem>>, vector<1x16x128xf32>
    %32 = vector.shape_cast %31 : vector<1x16x128xf32> to vector<16x128xf32>
    %33 = vector.shape_cast %30 : vector<16x128xf32> to vector<1x16x128xf32>
    tpu.vector_store %arg5[%c0_19, %c0_20, %c0_21], %33 {strides = array<i32>} : memref<1x16x128xf32, #tpu.memory_space<vmem>>, vector<1x16x128xf32>,
    %cst_22 = arith.constant dense<0.000000e+00> : vector<128xf32>
    %34 = vector.multi_reduction <add>, %30, %cst_22 [0] : vector<16x128xf32> to vector<128xf32>
    %35 = vector.shape_cast %34 : vector<128xf32> to vector<1x128xf32>
    %36 = arith.mulf %30, %30 : vector<16x128xf32>
    %cst_23 = arith.constant dense<0.000000e+00> : vector<128xf32>
    %37 = vector.multi_reduction <add>, %36, %cst_23 [0] : vector<16x128xf32> to vector<128xf32>
    %38 = vector.shape_cast %37 : vector<128xf32> to vector<1x128xf32>
    %39 = tpu.concatenate %35, %38 in 0 : vector<1x128xf32>, vector<1x128xf32> -> vector<2x128xf32>
    %c0_24 = arith.constant 0 : index
    %c0_25 = arith.constant 0 : index
    %c0_26 = arith.constant 0 : index
    %40 = vector.load %arg6[%c0_24, %c0_25, %c0_26] : memref<1x2x128xf32, #tpu.memory_space<vmem>>, vector<1x2x128xf32>
    %41 = vector.shape_cast %40 : vector<1x2x128xf32> to vector<2x128xf32>
    %42 = vector.shape_cast %39 : vector<2x128xf32> to vector<1x2x128xf32>
    tpu.vector_store %arg6[%c0_24, %c0_25, %c0_26], %42 {strides = array<i32>} : memref<1x2x128xf32, #tpu.memory_space<vmem>>, vector<1x2x128xf32>,
    return
  }
  func.func @transform_0(%arg0: i32) -> (i32, i32, i32) {
    %c0_i32 = arith.constant 0 : i32
    %c0_i32_0 = arith.constant 0 : i32
    %c0_i32_1 = arith.constant 0 : i32
    return %arg0, %c0_i32, %c0_i32_0 : i32, i32, i32
  }
  func.func @transform_1(%arg0: i32) -> (i32, i32, i32) {
    %c0_i32 = arith.constant 0 : i32
    %c0_i32_0 = arith.constant 0 : i32
    %c0_i32_1 = arith.constant 0 : i32
    %c0_i32_2 = arith.constant 0 : i32
    return %c0_i32, %c0_i32_0, %c0_i32_1 : i32, i32, i32
  }
  func.func @transform_2(%arg0: i32) -> (i32, i32) {
    %c0_i32 = arith.constant 0 : i32
    %c0_i32_0 = arith.constant 0 : i32
    %c0_i32_1 = arith.constant 0 : i32
    return %c0_i32, %c0_i32_0 : i32, i32
  }
  func.func @transform_3(%arg0: i32) -> (i32, i32) {
    %c0_i32 = arith.constant 0 : i32
    %c0_i32_0 = arith.constant 0 : i32
    %c0_i32_1 = arith.constant 0 : i32
    return %c0_i32, %c0_i32_0 : i32, i32
  }
  func.func @transform_4(%arg0: i32) -> (i32, i32, i32) {
    %c0_i32 = arith.constant 0 : i32
    %c0_i32_0 = arith.constant 0 : i32
    %c0_i32_1 = arith.constant 0 : i32
    return %arg0, %c0_i32, %c0_i32_0 : i32, i32, i32
  }
  func.func @transform_5(%arg0: i32) -> (i32, i32, i32) {
    %c0_i32 = arith.constant 0 : i32
    %c0_i32_0 = arith.constant 0 : i32
    %c0_i32_1 = arith.constant 0 : i32
    return %arg0, %c0_i32, %c0_i32_0 : i32, i32, i32
  }
}

module attributes {stable_mosaic.version = 11 : i64} {
  func.func @_bn_relu_kernel(%arg0: i32, %arg1: memref<1x16x128xf32, #tpu.memory_space<vmem>>, %arg2: memref<1x128xf32, #tpu.memory_space<vmem>>, %arg3: memref<1x128xf32, #tpu.memory_space<vmem>>, %arg4: memref<1x16x128xf32, #tpu.memory_space<vmem>>) attributes {dimension_semantics = [#tpu.dimension_semantics<parallel>], iteration_bounds = array<i64: 2>, scalar_prefetch = 0 : i64, scratch_operands = 0 : i64, tpu.core_type = #tpu.core_type<tc>, window_params = [{transform_indices = @transform_0, window_bounds = array<i64: 1, 16, 128>}, {pipeline_mode = #tpu.pipeline_mode<synchronous>, transform_indices = @transform_1, window_bounds = array<i64: 1, 128>}, {pipeline_mode = #tpu.pipeline_mode<synchronous>, transform_indices = @transform_2, window_bounds = array<i64: 1, 128>}, {transform_indices = @transform_3, window_bounds = array<i64: 1, 16, 128>}]} {
    %c0 = arith.constant 0 : index
    %c0_0 = arith.constant 0 : index
    %c0_1 = arith.constant 0 : index
    %0 = vector.load %arg1[%c0, %c0_0, %c0_1] : memref<1x16x128xf32, #tpu.memory_space<vmem>>, vector<1x16x128xf32>
    %1 = vector.shape_cast %0 : vector<1x16x128xf32> to vector<16x128xf32>
    %c0_2 = arith.constant 0 : index
    %c0_3 = arith.constant 0 : index
    %2 = vector.load %arg2[%c0_2, %c0_3] : memref<1x128xf32, #tpu.memory_space<vmem>>, vector<1x128xf32>
    %3 = vector.broadcast %2 : vector<1x128xf32> to vector<16x128xf32>
    %4 = arith.mulf %1, %3 : vector<16x128xf32>
    %c0_4 = arith.constant 0 : index
    %c0_5 = arith.constant 0 : index
    %5 = vector.load %arg3[%c0_4, %c0_5] : memref<1x128xf32, #tpu.memory_space<vmem>>, vector<1x128xf32>
    %6 = vector.broadcast %5 : vector<1x128xf32> to vector<16x128xf32>
    %7 = arith.addf %4, %6 : vector<16x128xf32>
    %cst = arith.constant 0.000000e+00 : f32
    %8 = vector.broadcast %cst : f32 to vector<16x128xf32>
    %9 = arith.maximumf %7, %8 : vector<16x128xf32>
    %c0_6 = arith.constant 0 : index
    %c0_7 = arith.constant 0 : index
    %c0_8 = arith.constant 0 : index
    %10 = vector.load %arg4[%c0_6, %c0_7, %c0_8] : memref<1x16x128xf32, #tpu.memory_space<vmem>>, vector<1x16x128xf32>
    %11 = vector.shape_cast %10 : vector<1x16x128xf32> to vector<16x128xf32>
    %12 = vector.shape_cast %9 : vector<16x128xf32> to vector<1x16x128xf32>
    tpu.vector_store %arg4[%c0_6, %c0_7, %c0_8], %12 {strides = array<i32>} : memref<1x16x128xf32, #tpu.memory_space<vmem>>, vector<1x16x128xf32>,
    return
  }
  func.func @transform_0(%arg0: i32) -> (i32, i32, i32) {
    %c0_i32 = arith.constant 0 : i32
    %c0_i32_0 = arith.constant 0 : i32
    %c0_i32_1 = arith.constant 0 : i32
    return %arg0, %c0_i32, %c0_i32_0 : i32, i32, i32
  }
  func.func @transform_1(%arg0: i32) -> (i32, i32) {
    %c0_i32 = arith.constant 0 : i32
    %c0_i32_0 = arith.constant 0 : i32
    %c0_i32_1 = arith.constant 0 : i32
    return %c0_i32, %c0_i32_0 : i32, i32
  }
  func.func @transform_2(%arg0: i32) -> (i32, i32) {
    %c0_i32 = arith.constant 0 : i32
    %c0_i32_0 = arith.constant 0 : i32
    %c0_i32_1 = arith.constant 0 : i32
    return %c0_i32, %c0_i32_0 : i32, i32
  }
  func.func @transform_3(%arg0: i32) -> (i32, i32, i32) {
    %c0_i32 = arith.constant 0 : i32
    %c0_i32_0 = arith.constant 0 : i32
    %c0_i32_1 = arith.constant 0 : i32
    return %arg0, %c0_i32, %c0_i32_0 : i32, i32, i32
  }
}

</mosaic_0001>

<llo_original>
// kernel: tile.23
$region0: #{tile.23}
  #allocation0 [shape = 's32[1]{0}', space=sflag, size = 0x4, scoped, tag = 'scoped memory for tile.23']
  %s0 = inlined_call_operand.vmem [shape: f32[8], index: 0, kind: input, shape index: {}]
  %s1 = inlined_call_operand.vmem [shape: f32[16,8], index: 1, kind: output, shape index: {}]
  // Predicated region
  $region2: #{tile.23} parent=0 // pred_check
    _
  $region3: #{tile.23} parent=0 // pred_check_branch
    %3 = sbr.rel (0) target = $region5
  $region4: #{tile.23} parent=0 // pred_region
    _
  $region5: #{tile.23} parent=0 // pred_fallthru
    _
  %v4 = vld [vmem:[%s0] ss:$0 sm:$0xff]
  %5 = vst [vmem:[%s1] sm:$0xff] %v4
  %s6 = scalar_lea.vmem %s1, 8
  %7 = vst [vmem:[%s6] sm:$0xff] %v4

// kernel: tile.24
$region0: #{tile.24}
  %s0 = inlined_call_operand.vmem [shape: f32[16,8], index: 0, kind: input, shape index: {}]
  %s1 = inlined_call_operand.vmem [shape: f32[1,128], index: 1, kind: output, shape index: {}]
  $region1: #{tile.24} parent=0
    #allocation0 [shape = 'u8[4096]{0}', space=vmem, size = 0x1000, scoped, tag = 'scoped mem for output reshape']
    %v2 = vld [vmem:[%s0] sm:$0x1]
    %vm3 = vcmask 64512
    %4 = vst.msk [vmem:[#allocation0] sm:$0x1] %vm3, %v2
    %s5 = scalar_lea.vmem %s0, 15
    %v6 = vld [vmem:[%s5] sm:$0x1]
    %7 = vrot.lane.b32.xlu0 %v6, 120
    %v8 = vpop.permute.xlu0 %7
    %vm9 = vcmask 1048512
    %10 = vst.msk [vmem:[#allocation0] sm:$0x1] %vm9, %v8
    %s11 = scalar_lea.vmem %s0, 14
    %v12 = vld [vmem:[%s11] sm:$0x1]
    %13 = vrot.lane.b32.xlu0 %v12, 112
    %v14 = vpop.permute.xlu0 %13
    %vm15 = vcmask 982912
    %16 = vst.msk [vmem:[#allocation0] sm:$0x1] %vm15, %v14
    %s17 = scalar_lea.vmem %s0, 13
    %v18 = vld [vmem:[%s17] sm:$0x1]
    %19 = vrot.lane.b32.xlu0 %v18, 104
    %v20 = vpop.permute.xlu0 %19
    %vm21 = vcmask 917312
    %22 = vst.msk [vmem:[#allocation0] sm:$0x1] %vm21, %v20
    %s23 = scalar_lea.vmem %s0, 12
    %v24 = vld [vmem:[%s23] sm:$0x1]
    %25 = vrot.lane.b32.xlu0 %v24, 96
    %v26 = vpop.permute.xlu0 %25
    %vm27 = vcmask 851712
    %28 = vst.msk [vmem:[#allocation0] sm:$0x1] %vm27, %v26
    %s29 = scalar_lea.vmem %s0, 11
    %v30 = vld [vmem:[%s29] sm:$0x1]
    %31 = vrot.lane.b32.xlu0 %v30, 88
    %v32 = vpop.permute.xlu0 %31
    %vm33 = vcmask 786112
    %34 = vst.msk [vmem:[#allocation0] sm:$0x1] %vm33, %v32
    %s35 = scalar_lea.vmem %s0, 10
    %v36 = vld [vmem:[%s35] sm:$0x1]
    %37 = vrot.lane.b32.xlu0 %v36, 80
    %v38 = vpop.permute.xlu0 %37
    %vm39 = vcmask 720512
    %40 = vst.msk [vmem:[#allocation0] sm:$0x1] %vm39, %v38
    %s41 = scalar_lea.vmem %s0, 9
    %v42 = vld [vmem:[%s41] sm:$0x1]
    %43 = vrot.lane.b32.xlu0 %v42, 72
    %v44 = vpop.permute.xlu0 %43
    %vm45 = vcmask 654912
    %46 = vst.msk [vmem:[#allocation0] sm:$0x1] %vm45, %v44
    %s47 = scalar_lea.vmem %s0, 8
    %v48 = vld [vmem:[%s47] sm:$0x1]
    %49 = vrot.lane.b32.xlu0 %v48, 64
    %v50 = vpop.permute.xlu0 %49
    %vm51 = vcmask 589312
    %52 = vst.msk [vmem:[#allocation0] sm:$0x1] %vm51, %v50
    %s53 = scalar_lea.vmem %s0, 7
    %v54 = vld [vmem:[%s53] sm:$0x1]
    %55 = vrot.lane.b32.xlu0 %v54, 56
    %v56 = vpop.permute.xlu0 %55
    %vm57 = vcmask 523712
    %58 = vst.msk [vmem:[#allocation0] sm:$0x1] %vm57, %v56
    %s59 = scalar_lea.vmem %s0, 6
    %v60 = vld [vmem:[%s59] sm:$0x1]
    %61 = vrot.lane.b32.xlu0 %v60, 48
    %v62 = vpop.permute.xlu0 %61
    %vm63 = vcmask 458112
    %64 = vst.msk [vmem:[#allocation0] sm:$0x1] %vm63, %v62
    %s65 = scalar_lea.vmem %s0, 5
    %v66 = vld [vmem:[%s65] sm:$0x1]
    %67 = vrot.lane.b32.xlu0 %v66, 40
    %v68 = vpop.permute.xlu0 %67
    %vm69 = vcmask 392512
    %70 = vst.msk [vmem:[#allocation0] sm:$0x1] %vm69, %v68
    %s71 = scalar_lea.vmem %s0, 4
    %v72 = vld [vmem:[%s71] sm:$0x1]
    %73 = vrot.lane.b32.xlu0 %v72, 32
    %v74 = vpop.permute.xlu0 %73
    %vm75 = vcmask 326912
    %76 = vst.msk [vmem:[#allocation0] sm:$0x1] %vm75, %v74
    %s77 = scalar_lea.vmem %s0, 3
    %v78 = vld [vmem:[%s77] sm:$0x1]
    %79 = vrot.lane.b32.xlu0 %v78, 24
    %v80 = vpop.permute.xlu0 %79
    %vm81 = vcmask 261312
    %82 = vst.msk [vmem:[#allocation0] sm:$0x1] %vm81, %v80
    %s83 = scalar_lea.vmem %s0, 2
    %v84 = vld [vmem:[%s83] sm:$0x1]
    %85 = vrot.lane.b32.xlu0 %v84, 16
    %v86 = vpop.permute.xlu0 %85
    %vm87 = vcmask 195712
    %88 = vst.msk [vmem:[#allocation0] sm:$0x1] %vm87, %v86
    %s89 = scalar_lea.vmem %s0, 1
    %v90 = vld [vmem:[%s89] sm:$0x1]
    %91 = vrot.lane.b32.xlu0 %v90, 8
    %v92 = vpop.permute.xlu0 %91
    %vm93 = vcmask 130112
    %94 = vst.msk [vmem:[#allocation0] sm:$0x1] %vm93, %v92
    %s96 = sshllo.u32 0, 1
    %v98 = vld [vmem:[#allocation0] sm:%s96]
    %s99 = sshllo.u32 0, 1
    %100 = vst [vmem:[%s1] sm:%s99] %v98

// kernel: conv_block_forward.3
$region0: #{conv_block_forward.3}
  #allocation0 [shape = 'u32[]', space=smem, size = 0x4, offset = 0x4, fixed_abs, tag = 'smem constant byte address 0x4 - core index']
  #allocation1 [shape = 'u32[144,128]{1,0:T(1,128)}', space=vmem, size = 0x12000, scoped, tag = 'internal scratch']
  %s0 = inlined_call_operand.vmem [shape: f32[2,16,64], index: 0, kind: input, shape index: {}]
  %s1 = inlined_call_operand.vmem [shape: bf16[3,72,128], index: 1, kind: input, shape index: {}]
  %s2 = inlined_call_operand.vmem [shape: f32[1,64], index: 2, kind: input, shape index: {}]
  %s3 = inlined_call_operand.vmem [shape: f32[1,64], index: 3, kind: input, shape index: {}]
  %s4 = inlined_call_operand.vmem [shape: f32[2,16,128], index: 4, kind: output, shape index: {0}]
  %s5 = inlined_call_operand.vmem [shape: f32[2,2,128], index: 5, kind: output, shape index: {1}]
  %6 = xla_tuple %s4, %s5
  %s7 = sld [smem:[#allocation0]]
  $region57: #{conv_block_forward.3} parent=0
    _
  %s9 = ssub.s32 1, %s7
  %s10 = scalar_select 0, %s9, %s7
  loop: start=0, step=1, limit=4
  $region2: #{conv_block_forward.3} parent=0 // loop_pre_header
    _
  $region3: #{conv_block_forward.3} parent=0 // loop_header
    %s12 = sphi 0, %s16
    %p13 = scmp.ge.s32.totalorder %s12, 4
    %s22 = sphi 0, %s24
    %s25 = sphi 0, %s22
    %s26 = sphi 0, %s25
    %s42 = sphi 0, %s26
    %s46 = sphi 0, %s46
    %s48 = sphi 0, %s46
    %s49 = sphi 0, %s48
    %s63 = sphi 0, %s49
    %s67 = sphi 0, %s67
    %s69 = sphi 0, %s67
    %s70 = sphi 0, %s69
    %s84 = sphi 0, %s70
    %s88 = sphi 0, %s88
    %s90 = sphi 0, %s88
    %s91 = sphi 0, %s90
    %s105 = sphi 0, %s91
    %s111 = sphi 0, %s113
    %s114 = sphi 0, %s111
    %s115 = sphi 0, %s114
    %s131 = sphi 0, %s115
    %s137 = sphi 0, %s139
    %s140 = sphi 0, %s137
    %s141 = sphi 0, %s140
    %s157 = sphi 0, %s141
  $region4: #{conv_block_forward.3} parent=0 // loop_header_branch
    %15 = sbr.rel (%p13) target = $region8
  $region5: #{conv_block_forward.3} parent=0 // loop_body
    %s17 = ssub.s32 %s12, 1
    %s18 = ssub.s32 %s12, 2
    %s19 = sadd.s32 %s12, 1
    %s20 = ssub.s32 %s12, %s19
    %p21 = scmp.eq.s32.totalorder %s20, 0
    %s23 = sadd.s32 %s22, 1
    %s24 = scalar_select %p21, %s22, %s23
    %p27 = pneg %p21
    %p28 = scmp.eq.s32.totalorder %s12, 1
    %p29 = por %p27, %p28
    %p30 = scmp.ne.s32.totalorder %s22, %s25
    %p31 = scmp.eq.s32.totalorder %s12, 0
    %p32 = por %p30, %p31
    %p33 = scmp.ne.s32.totalorder %s22, %s25
    %p34 = scmp.eq.s32.totalorder %s17, 1
    %p35 = por %p33, %p34
    %p36 = scmp.ne.s32.totalorder %s25, %s26
    %p37 = scmp.eq.s32.totalorder %s17, 0
    %p38 = por %p36, %p37
    %p39 = scmp.ne.s32.totalorder %s25, %s26
    %p40 = scmp.eq.s32.totalorder %s18, 1
    %p41 = por %p39, %p40
    %p43 = scmp.ne.s32.totalorder %s26, %s42
    %p44 = scmp.eq.s32.totalorder %s18, 0
    %p45 = por %p43, %p44
    %s47 = sadd.s32 %s46, 1
    %p50 = scmp.eq.s32.totalorder %s12, 1
    %p51 = scmp.ne.s32.totalorder %s46, %s48
    %p52 = scmp.eq.s32.totalorder %s12, 0
    %p53 = por %p51, %p52
    %p54 = scmp.ne.s32.totalorder %s46, %s48
    %p55 = scmp.eq.s32.totalorder %s17, 1
    %p56 = por %p54, %p55
    %p57 = scmp.ne.s32.totalorder %s48, %s49
    %p58 = scmp.eq.s32.totalorder %s17, 0
    %p59 = por %p57, %p58
    %p60 = scmp.ne.s32.totalorder %s48, %s49
    %p61 = scmp.eq.s32.totalorder %s18, 1
    %p62 = por %p60, %p61
    %p64 = scmp.ne.s32.totalorder %s49, %s63
    %p65 = scmp.eq.s32.totalorder %s18, 0
    %p66 = por %p64, %p65
    %s68 = sadd.s32 %s67, 1
    %p71 = scmp.eq.s32.totalorder %s12, 1
    %p72 = scmp.ne.s32.totalorder %s67, %s69
    %p73 = scmp.eq.s32.totalorder %s12, 0
    %p74 = por %p72, %p73
    %p75 = scmp.ne.s32.totalorder %s67, %s69
    %p76 = scmp.eq.s32.totalorder %s17, 1
    %p77 = por %p75, %p76
    %p78 = scmp.ne.s32.totalorder %s69, %s70
    %p79 = scmp.eq.s32.totalorder %s17, 0
    %p80 = por %p78, %p79
    %p81 = scmp.ne.s32.totalorder %s69, %s70
    %p82 = scmp.eq.s32.totalorder %s18, 1
    %p83 = por %p81, %p82
    %p85 = scmp.ne.s32.totalorder %s70, %s84
    %p86 = scmp.eq.s32.totalorder %s18, 0
    %p87 = por %p85, %p86
    %s89 = sadd.s32 %s88, 1
    %p92 = scmp.eq.s32.totalorder %s12, 1
    %p93 = scmp.ne.s32.totalorder %s88, %s90
    %p94 = scmp.eq.s32.totalorder %s12, 0
    %p95 = por %p93, %p94
    %p96 = scmp.ne.s32.totalorder %s88, %s90
    %p97 = scmp.eq.s32.totalorder %s17, 1
    %p98 = por %p96, %p97
    %p99 = scmp.ne.s32.totalorder %s90, %s91
    %p100 = scmp.eq.s32.totalorder %s17, 0
    %p101 = por %p99, %p100
    %p102 = scmp.ne.s32.totalorder %s90, %s91
    %p103 = scmp.eq.s32.totalorder %s18, 1
    %p104 = por %p102, %p103
    %p106 = scmp.ne.s32.totalorder %s91, %s105
    %p107 = scmp.eq.s32.totalorder %s18, 0
    %p108 = por %p106, %p107
    %s109 = ssub.s32 %s12, %s19
    %p110 = scmp.eq.s32.totalorder %s109, 0
    %s112 = sadd.s32 %s111, 1
    %s113 = scalar_select %p110, %s111, %s112
    %p116 = pneg %p110
    %p117 = scmp.eq.s32.totalorder %s12, 1
    %p118 = por %p116, %p117
    %p119 = scmp.ne.s32.totalorder %s111, %s114
    %p120 = scmp.eq.s32.totalorder %s12, 0
    %p121 = por %p119, %p120
    %p122 = scmp.ne.s32.totalorder %s111, %s114
    %p123 = scmp.eq.s32.totalorder %s17, 1
    %p124 = por %p122, %p123
    %p125 = scmp.ne.s32.totalorder %s114, %s115
    %p126 = scmp.eq.s32.totalorder %s17, 0
    %p127 = por %p125, %p126
    %p128 = scmp.ne.s32.totalorder %s114, %s115
    %p129 = scmp.eq.s32.totalorder %s18, 1
    %p130 = por %p128, %p129
    %p132 = scmp.ne.s32.totalorder %s115, %s131
    %p133 = scmp.eq.s32.totalorder %s18, 0
    %p134 = por %p132, %p133
    %s135 = ssub.s32 %s12, %s19
    %p136 = scmp.eq.s32.totalorder %s135, 0
    %s138 = sadd.s32 %s137, 1
    %s139 = scalar_select %p136, %s137, %s138
    %p142 = pneg %p136
    %p143 = scmp.eq.s32.totalorder %s12, 1
    %p144 = por %p142, %p143
    %p145 = scmp.ne.s32.totalorder %s137, %s140
    %p146 = scmp.eq.s32.totalorder %s12, 0
    %p147 = por %p145, %p146
    %p148 = scmp.ne.s32.totalorder %s137, %s140
    %p149 = scmp.eq.s32.totalorder %s17, 1
    %p150 = por %p148, %p149
    %p151 = scmp.ne.s32.totalorder %s140, %s141
    %p152 = scmp.eq.s32.totalorder %s17, 0
    %p153 = por %p151, %p152
    %p154 = scmp.ne.s32.totalorder %s140, %s141
    %p155 = scmp.eq.s32.totalorder %s18, 1
    %p156 = por %p154, %p155
    %p158 = scmp.ne.s32.totalorder %s141, %s157
    %p159 = scmp.eq.s32.totalorder %s18, 0
    %p160 = por %p158, %p159
    %p161 = scmp.le.s32.totalorder 1, %s12
    %p162 = scmp.lt.s32.totalorder %s12, 3
    %p163 = pnand %p161, %p162
    %p164 = pneg %p163
    // Predicated region
    $region9: #{conv_block_forward.3} parent=5 // pred_check
      _
    $region10: #{conv_block_forward.3} parent=5 // pred_check_branch
      %166 = sbr.rel (%p163) target = $region12
    $region11: #{conv_block_forward.3} parent=5 // pred_region
      %s167 = ssub.s32 %s12, 1
      // Predicated region
      $region13: #{conv_block_forward.3} parent=11 // pred_check
        %p168 = pneg %p59
      $region14: #{conv_block_forward.3} parent=11 // pred_check_branch
        %170 = sbr.rel (%p168) target = $region16
      $region15: #{conv_block_forward.3} parent=11 // pred_region
        _
      $region16: #{conv_block_forward.3} parent=11 // pred_fallthru
        _
      // Predicated region
      $region17: #{conv_block_forward.3} parent=11 // pred_check
        %p171 = pneg %p80
      $region18: #{conv_block_forward.3} parent=11 // pred_check_branch
        %173 = sbr.rel (%p171) target = $region20
      $region19: #{conv_block_forward.3} parent=11 // pred_region
        _
      $region20: #{conv_block_forward.3} parent=11 // pred_fallthru
        _
      // Predicated region
      $region21: #{conv_block_forward.3} parent=11 // pred_check
        %p174 = pneg %p101
      $region22: #{conv_block_forward.3} parent=11 // pred_check_branch
        %176 = sbr.rel (%p174) target = $region24
      $region23: #{conv_block_forward.3} parent=11 // pred_region
        _
      $region24: #{conv_block_forward.3} parent=11 // pred_fallthru
        _
    $region12: #{conv_block_forward.3} parent=5 // pred_fallthru
      _
    %p177 = scmp.lt.s32.totalorder %s12, 2
    // Predicated region
    $region25: #{conv_block_forward.3} parent=5 // pred_check
      %p178 = pneg %p177
    $region26: #{conv_block_forward.3} parent=5 // pred_check_branch
      %180 = sbr.rel (%p178) target = $region28
    $region27: #{conv_block_forward.3} parent=5 // pred_region
      // Predicated region
      $region29: #{conv_block_forward.3} parent=27 // pred_check
        %p181 = pneg %p32
      $region30: #{conv_block_forward.3} parent=27 // pred_check_branch
        %183 = sbr.rel (%p181) target = $region32
      $region31: #{conv_block_forward.3} parent=27 // pred_region
        %p184 = scmp.lt.s32.totalorder %s12, 1
        %s185 = scalar_select %p184, %s12, 1
        %s186 = smul.addr %s185, 2
        %s187 = smul.addr %s186, 8
        %s188 = scalar_lea.vmem %s0, %s187
      $region32: #{conv_block_forward.3} parent=27 // pred_fallthru
        _
    $region28: #{conv_block_forward.3} parent=5 // pred_fallthru
      _
    %p189 = scmp.le.s32.totalorder 1, %s12
    %p190 = scmp.lt.s32.totalorder %s12, 3
    %p191 = pnand %p189, %p190
    %p192 = pneg %p191
    // Predicated region
    $region33: #{conv_block_forward.3} parent=5 // pred_check
      _
    $region34: #{conv_block_forward.3} parent=5 // pred_check_branch
      %194 = sbr.rel (%p191) target = $region36
    $region35: #{conv_block_forward.3} parent=5 // pred_region
      %s195 = ssub.s32 %s12, 1
      %p196 = scmp.lt.s32.totalorder %s17, 1
      %s197 = scalar_select %p196, %s17, 1
      %s198 = smul.addr %s197, 2
      %s199 = smul.addr %s198, 8
      %s200 = scalar_lea.vmem %s0, %s199
      %p201 = pneg %p38
      %p202 = pneg %p35
      %p203 = pneg %p59
      %p204 = pneg %p56
      %p205 = pneg %p80
      %p206 = pneg %p77
      %p207 = pneg %p101
      %p208 = pneg %p98
      %p209 = pneg %p127
      %p210 = pneg %p124
      %p211 = scmp.lt.s32.totalorder %s17, 1
      %s212 = scalar_select %p211, %s17, 1
      %s213 = smul.addr %s212, 2
      %s214 = smul.addr %s213, 8
      %s215 = scalar_lea.vmem %s4, %s214
      %p216 = pneg %p153
      %p217 = pneg %p150
      %p218 = scmp.lt.s32.totalorder %s17, 1
      %s219 = scalar_select %p218, %s17, 1
      %s220 = smul.addr %s219, 2
      %s221 = scalar_lea.vmem %s5, %s220
      %p222 = scmp.lt.s32.totalorder %s17, 1
      %s223 = scalar_select %p222, %s17, 1
      %s224 = smul.addr %s223, 2
      %s225 = smul.addr %s224, 8
      %s226 = scalar_lea.vmem %s0, %s225
      %p227 = scmp.lt.s32.totalorder %s17, 1
      %s228 = scalar_select %p227, %s17, 1
      %s229 = smul.addr %s228, 2
      %s230 = smul.addr %s229, 8
      %s231 = scalar_lea.vmem %s4, %s230
      %p232 = scmp.lt.s32.totalorder %s17, 1
      %s233 = scalar_select %p232, %s17, 1
      %s234 = smul.addr %s233, 2
      %s235 = scalar_lea.vmem %s5, %s234
      %v237 = vld [vmem:[%s226] sm:$0xff]
      %v238 = vld [vmem:[%s226 + $0x8] sm:$0xff]
      %v239 = vld [vmem:[%s2] sm:$0x1]
      %v241 = vlaneseq
      %v242 = vshrl.u32 %v241, 7
      %v243 = vsub.s32 0, %v242
      %v244 = vrot.slane %v239, %v243
      %v246 = vmul.f32 %v237, %v244
      %v247 = vmul.f32 %v238, %v244
      %v248 = vld [vmem:[%s3] sm:$0x1]
      %v250 = vlaneseq
      %v251 = vshrl.u32 %v250, 7
      %v252 = vsub.s32 0, %v251
      %v253 = vrot.slane %v248, %v252
      %v255 = vadd.f32 %v246, %v253
      %v256 = vadd.f32 %v247, %v253
      %259 = vrot.lane.b32.xlu0 %v255, 4
      %v260 = vpop.permute.xlu0 %259
      %261 = vrot.lane.b32.xlu0 %v256, 4
      %v262 = vpop.permute.xlu0 %261
      %vm265 = vcmask 31744
      %v266 = vsel %vm265, 0.0, %v260
      %v267 = vsel %vm265, 0.0, %v262
      %vm268 = vcmask 556032
      %v269 = vsel %vm268, %v266, 0.0
      %v270 = vsel %vm268, %v267, 0.0
      %vm273 = vcmask 1040384
      %v274 = vrot.slane %v269, 7
      %v275 = vrot.slane %v270, 7
      %v276 = vsel %vm273, %v274, %v275
      %v280 = vsel %vm273, 0.0, %v274
      %v281 = vsel %vm273, %v275, 0.0
      %v282 = vpack.c.bf16 %v276, %v280
      %v283 = vpack.c.bf16 %v281, %v281
      %v284 = vld [vmem:[%s1] sm:$0xf]
      %v285 = vld [vmem:[%s1 + $0x4] sm:$0xf]
      %v286 = vld [vmem:[%s1 + $0x8] sm:$0xf]
      %v287 = vld [vmem:[%s1 + $0xc] sm:$0xf]
      %v288 = vld [vmem:[%s1 + $0x10] sm:$0xf]
      %v289 = vld [vmem:[%s1 + $0x14] sm:$0xf]
      %v290 = vld [vmem:[%s1 + $0x18] sm:$0xf]
      %v291 = vld [vmem:[%s1 + $0x1c] sm:$0xf]
      %v292 = vld [vmem:[%s1 + $0x20] sm:$0xf]
      %s293 = scalar_lea.vmem %s1, 36
      %v294 = vld [vmem:[%s293] sm:$0xf]
      %v295 = vld [vmem:[%s293 + $0x4] sm:$0xf]
      %v296 = vld [vmem:[%s293 + $0x8] sm:$0xf]
      %v297 = vld [vmem:[%s293 + $0xc] sm:$0xf]
      %v298 = vld [vmem:[%s293 + $0x10] sm:$0xf]
      %v299 = vld [vmem:[%s293 + $0x14] sm:$0xf]
      %v300 = vld [vmem:[%s293 + $0x18] sm:$0xf]
      %v301 = vld [vmem:[%s293 + $0x1c] sm:$0xf]
      %v302 = vld [vmem:[%s293 + $0x20] sm:$0xf]
      %vm303 = vsmask.f32 7424
      %v305 = vshrl.u32 %v282, 16
      %v307 = vshll.u32 %v282, 16
      %v309 = vrot.slane %v307, 1
      %v310 = vor.u32 %v305, %v309
      %v312 = vshll.u32 %v283, 16
      %v314 = vrot.slane %v312, 1
      %v315 = vsel %vm303, %v310, %v314
      %v325 = vunpack.c.l.b16 %v294
      %v326 = vunpack.c.l.b16 %v295
      %v327 = vunpack.c.l.b16 %v296
      %v328 = vunpack.c.l.b16 %v297
      %v329 = vunpack.c.l.b16 %v298
      %v330 = vunpack.c.l.b16 %v299
      %v331 = vunpack.c.l.b16 %v300
      %v332 = vunpack.c.l.b16 %v301
      %v333 = vunpack.c.l.b16 %v302
      %v334 = vpack.c.b16 %v326, %v325
      %v335 = vpack.c.b16 %v328, %v327
      %v336 = vpack.c.b16 %v330, %v329
      %v337 = vpack.c.b16 %v332, %v331
      %v338 = vpack.c.b16 %v333, %v333
      %vm343 = vcmask 588800
      %v345 = vsel %vm343, %v315, 0
      %vm347 = vcmask 1043456
      %v349 = vsel %vm347, %v338, 0
      %351 = vmatprep.subr.bf16.mxu0 0
      %352 = vmatpush1.bf16.msra.mxu0 %v334
      %353 = vmatprep.subr.bf16.mxu0 0
      %354 = vmatpush1.bf16.msra.mxu0 %v335
      %355 = vmatprep.subr.bf16.mxu0 0
      %356 = vmatpush1.bf16.msra.mxu0 %v336
      %357 = vmatprep.subr.bf16.mxu0 0
      %358 = vmatpush1.bf16.msra.mxu0 %v337
      %359 = vmatprep.subr.bf16.mxu0 0
      %360 = vmatpush1.bf16.msra.mxu0 %v349
      %361 = vmatprep.subr.bf16.mxu0 0
      %362 = vmatpush1.bf16.msra.mxu0 0
      %363 = vmatprep.subr.bf16.mxu0 0
      %364 = vmatpush1.bf16.msra.mxu0 0
      %365 = vmatprep.subr.bf16.mxu0 0
      %366 = vmatpush1.bf16.msra.mxu0 0
      %367 = vmatprep.subr.bf16.mxu0 0
      %368 = vmatpush1.bf16.msra.mxu0 0
      %369 = vmatprep.subr.bf16.mxu0 0
      %370 = vmatpush1.bf16.msra.mxu0 0
      %371 = vmatprep.subr.bf16.mxu0 0
      %372 = vmatpush1.bf16.msra.mxu0 0
      %373 = vmatprep.subr.bf16.mxu0 0
      %374 = vmatpush1.bf16.msra.mxu0 0
      %375 = vmatprep.subr.bf16.mxu0 0
      %376 = vmatpush1.bf16.msra.mxu0 0
      %377 = vmatprep.subr.bf16.mxu0 0
      %378 = vmatpush1.bf16.msra.mxu0 0
      %379 = vmatprep.subr.bf16.mxu0 0
      %380 = vmatpush1.bf16.msra.mxu0 0
      %381 = vmatprep.subr.bf16.mxu0 0
      %382 = vmatpush1.bf16.msra.mxu0 0
      %383 = vmatprep.mubr.bf16.mxu0 0
      %384 = vmatmul.mubr.bf16.gmra.mrb[0].mxu0 %v345
      %v385 = vpop.f32.mrb[0].mxu0
      %v386 = vadd.f32 0.0, %v385
      %v387 = vpop.f32.mrb[0].mxu0
      %v388 = vpop.f32.mrb[0].mxu0
      %v389 = vadd.f32 0.0, %v388
      %v390 = vpop.f32.mrb[0].mxu0
      %391 = vdwg.mxu0
      %v401 = vunpack.c.l.b16 %v284
      %v402 = vunpack.c.l.b16 %v285
      %v403 = vunpack.c.l.b16 %v286
      %v404 = vunpack.c.l.b16 %v287
      %v405 = vunpack.c.l.b16 %v288
      %v406 = vunpack.c.l.b16 %v289
      %v407 = vunpack.c.l.b16 %v290
      %v408 = vunpack.c.l.b16 %v291
      %v409 = vunpack.c.l.b16 %v292
      %v410 = vpack.c.b16 %v402, %v401
      %v411 = vpack.c.b16 %v404, %v403
      %v412 = vpack.c.b16 %v406, %v405
      %v413 = vpack.c.b16 %v408, %v407
      %v414 = vpack.c.b16 %v409, %v409
      %v419 = vsel %vm343, %v282, 0
      %v422 = vsel %vm347, %v414, 0
      %424 = vmatprep.subr.bf16.mxu0 0
      %425 = vmatpush1.bf16.msra.mxu0 %v410
      %426 = vmatprep.subr.bf16.mxu0 0
      %427 = vmatpush1.bf16.msra.mxu0 %v411
      %428 = vmatprep.subr.bf16.mxu0 0
      %429 = vmatpush1.bf16.msra.mxu0 %v412
      %430 = vmatprep.subr.bf16.mxu0 0
      %431 = vmatpush1.bf16.msra.mxu0 %v413
      %432 = vmatprep.subr.bf16.mxu0 0
      %433 = vmatpush1.bf16.msra.mxu0 %v422
      %434 = vmatprep.subr.bf16.mxu0 0
      %435 = vmatpush1.bf16.msra.mxu0 0
      %436 = vmatprep.subr.bf16.mxu0 0
      %437 = vmatpush1.bf16.msra.mxu0 0
      %438 = vmatprep.subr.bf16.mxu0 0
      %439 = vmatpush1.bf16.msra.mxu0 0
      %440 = vmatprep.subr.bf16.mxu0 0
      %441 = vmatpush1.bf16.msra.mxu0 0
      %442 = vmatprep.subr.bf16.mxu0 0
      %443 = vmatpush1.bf16.msra.mxu0 0
      %444 = vmatprep.subr.bf16.mxu0 0
      %445 = vmatpush1.bf16.msra.mxu0 0
      %446 = vmatprep.subr.bf16.mxu0 0
      %447 = vmatpush1.bf16.msra.mxu0 0
      %448 = vmatprep.subr.bf16.mxu0 0
      %449 = vmatpush1.bf16.msra.mxu0 0
      %450 = vmatprep.subr.bf16.mxu0 0
      %451 = vmatpush1.bf16.msra.mxu0 0
      %452 = vmatprep.subr.bf16.mxu0 0
      %453 = vmatpush1.bf16.msra.mxu0 0
      %454 = vmatprep.subr.bf16.mxu0 0
      %455 = vmatpush1.bf16.msra.mxu0 0
      %456 = vmatprep.mubr.bf16.mxu0 0
      %457 = vmatmul.mubr.bf16.gmra.mrb[0].mxu0 %v419
      %v458 = vpop.f32.mrb[0].mxu0
      %v459 = vadd.f32 %v386, %v458
      %v460 = vpop.f32.mrb[0].mxu0
      %v461 = vpop.f32.mrb[0].mxu0
      %v462 = vadd.f32 %v389, %v461
      %v463 = vpop.f32.mrb[0].mxu0
      %464 = vdwg.mxu0
      %s465 = scalar_lea.vmem %s1, 72
      %v466 = vld [vmem:[%s465] sm:$0xf]
      %v467 = vld [vmem:[%s465 + $0x4] sm:$0xf]
      %v468 = vld [vmem:[%s465 + $0x8] sm:$0xf]
      %v469 = vld [vmem:[%s465 + $0xc] sm:$0xf]
      %v470 = vld [vmem:[%s465 + $0x10] sm:$0xf]
      %v471 = vld [vmem:[%s465 + $0x14] sm:$0xf]
      %v472 = vld [vmem:[%s465 + $0x18] sm:$0xf]
      %v473 = vld [vmem:[%s465 + $0x1c] sm:$0xf]
      %v474 = vld [vmem:[%s465 + $0x20] sm:$0xf]
      %vm477 = vcmask 1046528
      %v478 = vrot.slane %v282, 1
      %v479 = vrot.slane %v283, 1
      %v480 = vsel %vm477, %v478, %v479
      %v490 = vunpack.c.l.b16 %v466
      %v491 = vunpack.c.l.b16 %v467
      %v492 = vunpack.c.l.b16 %v468
      %v493 = vunpack.c.l.b16 %v469
      %v494 = vunpack.c.l.b16 %v470
      %v495 = vunpack.c.l.b16 %v471
      %v496 = vunpack.c.l.b16 %v472
      %v497 = vunpack.c.l.b16 %v473
      %v498 = vunpack.c.l.b16 %v474
      %v499 = vpack.c.b16 %v491, %v490
      %v500 = vpack.c.b16 %v493, %v492
      %v501 = vpack.c.b16 %v495, %v494
      %v502 = vpack.c.b16 %v497, %v496
      %v503 = vpack.c.b16 %v498, %v498
      %v509 = vsel %vm343, %v480, 0
      %v512 = vsel %vm347, %v503, 0
      %514 = vmatprep.subr.bf16.mxu0 0
      %515 = vmatpush1.bf16.msra.mxu0 %v499
      %516 = vmatprep.subr.bf16.mxu0 0
      %517 = vmatpush1.bf16.msra.mxu0 %v500
      %518 = vmatprep.subr.bf16.mxu0 0
      %519 = vmatpush1.bf16.msra.mxu0 %v501
      %520 = vmatprep.subr.bf16.mxu0 0
      %521 = vmatpush1.bf16.msra.mxu0 %v502
      %522 = vmatprep.subr.bf16.mxu0 0
      %523 = vmatpush1.bf16.msra.mxu0 %v512
      %524 = vmatprep.subr.bf16.mxu0 0
      %525 = vmatpush1.bf16.msra.mxu0 0
      %526 = vmatprep.subr.bf16.mxu0 0
      %527 = vmatpush1.bf16.msra.mxu0 0
      %528 = vmatprep.subr.bf16.mxu0 0
      %529 = vmatpush1.bf16.msra.mxu0 0
      %530 = vmatprep.subr.bf16.mxu0 0
      %531 = vmatpush1.bf16.msra.mxu0 0
      %532 = vmatprep.subr.bf16.mxu0 0
      %533 = vmatpush1.bf16.msra.mxu0 0
      %534 = vmatprep.subr.bf16.mxu0 0
      %535 = vmatpush1.bf16.msra.mxu0 0
      %536 = vmatprep.subr.bf16.mxu0 0
      %537 = vmatpush1.bf16.msra.mxu0 0
      %538 = vmatprep.subr.bf16.mxu0 0
      %539 = vmatpush1.bf16.msra.mxu0 0
      %540 = vmatprep.subr.bf16.mxu0 0
      %541 = vmatpush1.bf16.msra.mxu0 0
      %542 = vmatprep.subr.bf16.mxu0 0
      %543 = vmatpush1.bf16.msra.mxu0 0
      %544 = vmatprep.subr.bf16.mxu0 0
      %545 = vmatpush1.bf16.msra.mxu0 0
      %546 = vmatprep.mubr.bf16.mxu0 0
      %547 = vmatmul.mubr.bf16.gmra.mrb[0].mxu0 %v509
      %v548 = vpop.f32.mrb[0].mxu0
      %v549 = vadd.f32 0.0, %v548
      %v550 = vpop.f32.mrb[0].mxu0
      %v551 = vpop.f32.mrb[0].mxu0
      %v552 = vadd.f32 0.0, %v551
      %v553 = vpop.f32.mrb[0].mxu0
      %554 = vdwg.mxu0
      %v555 = vadd.f32 %v459, %v549
      %v556 = vadd.f32 %v462, %v552
      %557 = vst [vmem:[%s231] sm:$0xff] %v555
      %558 = vst [vmem:[%s231 + $0x8] sm:$0xff] %v556
      %v559 = vadd.f32 %v555, %v556
      %v560 = vrot.slane %v559, 4
      %v561 = vadd.f32 %v559, %v560
      %v562 = vrot.slane %v561, 2
      %v563 = vadd.f32 %v561, %v562
      %v564 = vrot.slane %v563, 1
      %v565 = vadd.f32 %v563, %v564
      %v566 = vmul.f32 %v555, %v555
      %v567 = vmul.f32 %v556, %v556
      %v568 = vadd.f32 %v566, %v567
      %v569 = vrot.slane %v568, 4
      %v570 = vadd.f32 %v568, %v569
      %v571 = vrot.slane %v570, 2
      %v572 = vadd.f32 %v570, %v571
      %v573 = vrot.slane %v572, 1
      %v574 = vadd.f32 %v572, %v573
      %v575 = vsel %vm273, %v565, %v574
      %576 = vst [vmem:[%s235] sm:$0x3] %v575
      %p577 = scmp.lt.s32.totalorder %s17, 1
      %s578 = scalar_select %p577, %s17, 1
      %s579 = smul.addr %s578, 2
      %s580 = smul.addr %s579, 8
      %s581 = scalar_lea.vmem %s4, %s580
      %p582 = scmp.lt.s32.totalorder %s17, 1
      %s583 = scalar_select %p582, %s17, 1
      %s584 = smul.addr %s583, 2
      %s585 = scalar_lea.vmem %s5, %s584
      // Predicated region
      $region37: #{conv_block_forward.3} parent=35 // pred_check
        %p586 = pneg %p124
      $region38: #{conv_block_forward.3} parent=35 // pred_check_branch
        %588 = sbr.rel (%p586) target = $region40
      $region39: #{conv_block_forward.3} parent=35 // pred_region
        _
      $region40: #{conv_block_forward.3} parent=35 // pred_fallthru
        _
      // Predicated region
      $region41: #{conv_block_forward.3} parent=35 // pred_check
        %p589 = pneg %p150
      $region42: #{conv_block_forward.3} parent=35 // pred_check_branch
        %591 = sbr.rel (%p589) target = $region44
      $region43: #{conv_block_forward.3} parent=35 // pred_region
        _
      $region44: #{conv_block_forward.3} parent=35 // pred_fallthru
        _
    $region36: #{conv_block_forward.3} parent=5 // pred_fallthru
      _
    %p592 = scmp.le.s32.totalorder 2, %s12
    // Predicated region
    $region45: #{conv_block_forward.3} parent=5 // pred_check
      %p593 = pneg %p592
    $region46: #{conv_block_forward.3} parent=5 // pred_check_branch
      %595 = sbr.rel (%p593) target = $region48
    $region47: #{conv_block_forward.3} parent=5 // pred_region
      %s596 = ssub.s32 %s12, 2
      // Predicated region
      $region49: #{conv_block_forward.3} parent=47 // pred_check
        %p597 = pneg %p130
      $region50: #{conv_block_forward.3} parent=47 // pred_check_branch
        %599 = sbr.rel (%p597) target = $region52
      $region51: #{conv_block_forward.3} parent=47 // pred_region
        %p600 = scmp.lt.s32.totalorder %s18, 1
        %s601 = scalar_select %p600, %s18, 1
        %s602 = smul.addr %s601, 2
        %s603 = smul.addr %s602, 8
        %s604 = scalar_lea.vmem %s4, %s603
      $region52: #{conv_block_forward.3} parent=47 // pred_fallthru
        _
      // Predicated region
      $region53: #{conv_block_forward.3} parent=47 // pred_check
        %p605 = pneg %p156
      $region54: #{conv_block_forward.3} parent=47 // pred_check_branch
        %607 = sbr.rel (%p605) target = $region56
      $region55: #{conv_block_forward.3} parent=47 // pred_region
        %p608 = scmp.lt.s32.totalorder %s18, 1
        %s609 = scalar_select %p608, %s18, 1
        %s610 = smul.addr %s609, 2
        %s611 = scalar_lea.vmem %s5, %s610
      $region56: #{conv_block_forward.3} parent=47 // pred_fallthru
        _
    $region48: #{conv_block_forward.3} parent=5 // pred_fallthru
      _
  $region6: #{conv_block_forward.3} parent=0 // loop_footer
    %s16 = sadd.s32 1, %s12
  $region7: #{conv_block_forward.3} parent=0 // loop_footer_branch
    %11 = sbr.rel target = $region3
  $region8: #{conv_block_forward.3} parent=0 // loop_exit
    _

// kernel: conv_block_forward.5
$region0: #{conv_block_forward.5}
  #allocation0 [shape = 'u32[]', space=smem, size = 0x4, offset = 0x4, fixed_abs, tag = 'smem constant byte address 0x4 - core index']
  #allocation1 [shape = 'u32[144,128]{1,0:T(1,128)}', space=vmem, size = 0x12000, scoped, tag = 'internal scratch']
  %s0 = inlined_call_operand.vmem [shape: f32[2,16,128], index: 0, kind: input, shape index: {}]
  %s1 = inlined_call_operand.vmem [shape: f32[1,128], index: 1, kind: input, shape index: {}]
  %s2 = inlined_call_operand.vmem [shape: f32[1,128], index: 2, kind: input, shape index: {}]
  %s3 = inlined_call_operand.vmem [shape: f32[2,16,128], index: 3, kind: output, shape index: {}]
  %s4 = sld [smem:[#allocation0]]
  $region45: #{conv_block_forward.5} parent=0
    _
  %s6 = ssub.s32 1, %s4
  %s7 = scalar_select 0, %s6, %s4
  loop: start=0, step=1, limit=4
  $region2: #{conv_block_forward.5} parent=0 // loop_pre_header
    _
  $region3: #{conv_block_forward.5} parent=0 // loop_header
    %s9 = sphi 0, %s13
    %p10 = scmp.ge.s32.totalorder %s9, 4
    %s19 = sphi 0, %s21
    %s22 = sphi 0, %s19
    %s23 = sphi 0, %s22
    %s39 = sphi 0, %s23
    %s43 = sphi 0, %s43
    %s45 = sphi 0, %s43
    %s46 = sphi 0, %s45
    %s60 = sphi 0, %s46
    %s64 = sphi 0, %s64
    %s66 = sphi 0, %s64
    %s67 = sphi 0, %s66
    %s81 = sphi 0, %s67
    %s87 = sphi 0, %s89
    %s90 = sphi 0, %s87
    %s91 = sphi 0, %s90
    %s107 = sphi 0, %s91
  $region4: #{conv_block_forward.5} parent=0 // loop_header_branch
    %12 = sbr.rel (%p10) target = $region8
  $region5: #{conv_block_forward.5} parent=0 // loop_body
    %s14 = ssub.s32 %s9, 1
    %s15 = ssub.s32 %s9, 2
    %s16 = sadd.s32 %s9, 1
    %s17 = ssub.s32 %s9, %s16
    %p18 = scmp.eq.s32.totalorder %s17, 0
    %s20 = sadd.s32 %s19, 1
    %s21 = scalar_select %p18, %s19, %s20
    %p24 = pneg %p18
    %p25 = scmp.eq.s32.totalorder %s9, 1
    %p26 = por %p24, %p25
    %p27 = scmp.ne.s32.totalorder %s19, %s22
    %p28 = scmp.eq.s32.totalorder %s9, 0
    %p29 = por %p27, %p28
    %p30 = scmp.ne.s32.totalorder %s19, %s22
    %p31 = scmp.eq.s32.totalorder %s14, 1
    %p32 = por %p30, %p31
    %p33 = scmp.ne.s32.totalorder %s22, %s23
    %p34 = scmp.eq.s32.totalorder %s14, 0
    %p35 = por %p33, %p34
    %p36 = scmp.ne.s32.totalorder %s22, %s23
    %p37 = scmp.eq.s32.totalorder %s15, 1
    %p38 = por %p36, %p37
    %p40 = scmp.ne.s32.totalorder %s23, %s39
    %p41 = scmp.eq.s32.totalorder %s15, 0
    %p42 = por %p40, %p41
    %s44 = sadd.s32 %s43, 1
    %p47 = scmp.eq.s32.totalorder %s9, 1
    %p48 = scmp.ne.s32.totalorder %s43, %s45
    %p49 = scmp.eq.s32.totalorder %s9, 0
    %p50 = por %p48, %p49
    %p51 = scmp.ne.s32.totalorder %s43, %s45
    %p52 = scmp.eq.s32.totalorder %s14, 1
    %p53 = por %p51, %p52
    %p54 = scmp.ne.s32.totalorder %s45, %s46
    %p55 = scmp.eq.s32.totalorder %s14, 0
    %p56 = por %p54, %p55
    %p57 = scmp.ne.s32.totalorder %s45, %s46
    %p58 = scmp.eq.s32.totalorder %s15, 1
    %p59 = por %p57, %p58
    %p61 = scmp.ne.s32.totalorder %s46, %s60
    %p62 = scmp.eq.s32.totalorder %s15, 0
    %p63 = por %p61, %p62
    %s65 = sadd.s32 %s64, 1
    %p68 = scmp.eq.s32.totalorder %s9, 1
    %p69 = scmp.ne.s32.totalorder %s64, %s66
    %p70 = scmp.eq.s32.totalorder %s9, 0
    %p71 = por %p69, %p70
    %p72 = scmp.ne.s32.totalorder %s64, %s66
    %p73 = scmp.eq.s32.totalorder %s14, 1
    %p74 = por %p72, %p73
    %p75 = scmp.ne.s32.totalorder %s66, %s67
    %p76 = scmp.eq.s32.totalorder %s14, 0
    %p77 = por %p75, %p76
    %p78 = scmp.ne.s32.totalorder %s66, %s67
    %p79 = scmp.eq.s32.totalorder %s15, 1
    %p80 = por %p78, %p79
    %p82 = scmp.ne.s32.totalorder %s67, %s81
    %p83 = scmp.eq.s32.totalorder %s15, 0
    %p84 = por %p82, %p83
    %s85 = ssub.s32 %s9, %s16
    %p86 = scmp.eq.s32.totalorder %s85, 0
    %s88 = sadd.s32 %s87, 1
    %s89 = scalar_select %p86, %s87, %s88
    %p92 = pneg %p86
    %p93 = scmp.eq.s32.totalorder %s9, 1
    %p94 = por %p92, %p93
    %p95 = scmp.ne.s32.totalorder %s87, %s90
    %p96 = scmp.eq.s32.totalorder %s9, 0
    %p97 = por %p95, %p96
    %p98 = scmp.ne.s32.totalorder %s87, %s90
    %p99 = scmp.eq.s32.totalorder %s14, 1
    %p100 = por %p98, %p99
    %p101 = scmp.ne.s32.totalorder %s90, %s91
    %p102 = scmp.eq.s32.totalorder %s14, 0
    %p103 = por %p101, %p102
    %p104 = scmp.ne.s32.totalorder %s90, %s91
    %p105 = scmp.eq.s32.totalorder %s15, 1
    %p106 = por %p104, %p105
    %p108 = scmp.ne.s32.totalorder %s91, %s107
    %p109 = scmp.eq.s32.totalorder %s15, 0
    %p110 = por %p108, %p109
    %p111 = scmp.le.s32.totalorder 1, %s9
    %p112 = scmp.lt.s32.totalorder %s9, 3
    %p113 = pnand %p111, %p112
    %p114 = pneg %p113
    // Predicated region
    $region9: #{conv_block_forward.5} parent=5 // pred_check
      _
    $region10: #{conv_block_forward.5} parent=5 // pred_check_branch
      %116 = sbr.rel (%p113) target = $region12
    $region11: #{conv_block_forward.5} parent=5 // pred_region
      %s117 = ssub.s32 %s9, 1
      // Predicated region
      $region13: #{conv_block_forward.5} parent=11 // pred_check
        %p118 = pneg %p56
      $region14: #{conv_block_forward.5} parent=11 // pred_check_branch
        %120 = sbr.rel (%p118) target = $region16
      $region15: #{conv_block_forward.5} parent=11 // pred_region
        _
      $region16: #{conv_block_forward.5} parent=11 // pred_fallthru
        _
      // Predicated region
      $region17: #{conv_block_forward.5} parent=11 // pred_check
        %p121 = pneg %p77
      $region18: #{conv_block_forward.5} parent=11 // pred_check_branch
        %123 = sbr.rel (%p121) target = $region20
      $region19: #{conv_block_forward.5} parent=11 // pred_region
        _
      $region20: #{conv_block_forward.5} parent=11 // pred_fallthru
        _
    $region12: #{conv_block_forward.5} parent=5 // pred_fallthru
      _
    %p124 = scmp.lt.s32.totalorder %s9, 2
    // Predicated region
    $region21: #{conv_block_forward.5} parent=5 // pred_check
      %p125 = pneg %p124
    $region22: #{conv_block_forward.5} parent=5 // pred_check_branch
      %127 = sbr.rel (%p125) target = $region24
    $region23: #{conv_block_forward.5} parent=5 // pred_region
      // Predicated region
      $region25: #{conv_block_forward.5} parent=23 // pred_check
        %p128 = pneg %p29
      $region26: #{conv_block_forward.5} parent=23 // pred_check_branch
        %130 = sbr.rel (%p128) target = $region28
      $region27: #{conv_block_forward.5} parent=23 // pred_region
        %p131 = scmp.lt.s32.totalorder %s9, 1
        %s132 = scalar_select %p131, %s9, 1
        %s133 = smul.addr %s132, 2
        %s134 = smul.addr %s133, 8
        %s135 = scalar_lea.vmem %s0, %s134
      $region28: #{conv_block_forward.5} parent=23 // pred_fallthru
        _
    $region24: #{conv_block_forward.5} parent=5 // pred_fallthru
      _
    %p136 = scmp.le.s32.totalorder 1, %s9
    %p137 = scmp.lt.s32.totalorder %s9, 3
    %p138 = pnand %p136, %p137
    %p139 = pneg %p138
    // Predicated region
    $region29: #{conv_block_forward.5} parent=5 // pred_check
      _
    $region30: #{conv_block_forward.5} parent=5 // pred_check_branch
      %141 = sbr.rel (%p138) target = $region32
    $region31: #{conv_block_forward.5} parent=5 // pred_region
      %s142 = ssub.s32 %s9, 1
      %p143 = scmp.lt.s32.totalorder %s14, 1
      %s144 = scalar_select %p143, %s14, 1
      %s145 = smul.addr %s144, 2
      %s146 = smul.addr %s145, 8
      %s147 = scalar_lea.vmem %s0, %s146
      %p148 = pneg %p35
      %p149 = pneg %p32
      %p150 = pneg %p56
      %p151 = pneg %p53
      %p152 = pneg %p77
      %p153 = pneg %p74
      %p154 = pneg %p103
      %p155 = pneg %p100
      %p156 = scmp.lt.s32.totalorder %s14, 1
      %s157 = scalar_select %p156, %s14, 1
      %s158 = smul.addr %s157, 2
      %s159 = smul.addr %s158, 8
      %s160 = scalar_lea.vmem %s3, %s159
      %p161 = scmp.lt.s32.totalorder %s14, 1
      %s162 = scalar_select %p161, %s14, 1
      %s163 = smul.addr %s162, 2
      %s164 = smul.addr %s163, 8
      %s165 = scalar_lea.vmem %s0, %s164
      %p166 = scmp.lt.s32.totalorder %s14, 1
      %s167 = scalar_select %p166, %s14, 1
      %s168 = smul.addr %s167, 2
      %s169 = smul.addr %s168, 8
      %s170 = scalar_lea.vmem %s3, %s169
      %v171 = vld [vmem:[%s165] sm:$0xff]
      %v172 = vld [vmem:[%s165 + $0x8] sm:$0xff]
      %v173 = vld [vmem:[%s1] sm:$0x1]
      %v175 = vlaneseq
      %v176 = vshrl.u32 %v175, 7
      %v177 = vsub.s32 0, %v176
      %v178 = vrot.slane %v173, %v177
      %v180 = vmul.f32 %v171, %v178
      %v181 = vmul.f32 %v172, %v178
      %v182 = vld [vmem:[%s2] sm:$0x1]
      %v184 = vlaneseq
      %v185 = vshrl.u32 %v184, 7
      %v186 = vsub.s32 0, %v185
      %v187 = vrot.slane %v182, %v186
      %v189 = vadd.f32 %v180, %v187
      %v190 = vadd.f32 %v181, %v187
      %v191 = vmax.f32 %v189, 0.0
      %v192 = vmax.f32 %v190, 0.0
      %193 = vst [vmem:[%s170] sm:$0xff] %v191
      %194 = vst [vmem:[%s170 + $0x8] sm:$0xff] %v192
      %p195 = scmp.lt.s32.totalorder %s14, 1
      %s196 = scalar_select %p195, %s14, 1
      %s197 = smul.addr %s196, 2
      %s198 = smul.addr %s197, 8
      %s199 = scalar_lea.vmem %s3, %s198
      // Predicated region
      $region33: #{conv_block_forward.5} parent=31 // pred_check
        %p200 = pneg %p100
      $region34: #{conv_block_forward.5} parent=31 // pred_check_branch
        %202 = sbr.rel (%p200) target = $region36
      $region35: #{conv_block_forward.5} parent=31 // pred_region
        _
      $region36: #{conv_block_forward.5} parent=31 // pred_fallthru
        _
    $region32: #{conv_block_forward.5} parent=5 // pred_fallthru
      _
    %p203 = scmp.le.s32.totalorder 2, %s9
    // Predicated region
    $region37: #{conv_block_forward.5} parent=5 // pred_check
      %p204 = pneg %p203
    $region38: #{conv_block_forward.5} parent=5 // pred_check_branch
      %206 = sbr.rel (%p204) target = $region40
    $region39: #{conv_block_forward.5} parent=5 // pred_region
      %s207 = ssub.s32 %s9, 2
      // Predicated region
      $region41: #{conv_block_forward.5} parent=39 // pred_check
        %p208 = pneg %p106
      $region42: #{conv_block_forward.5} parent=39 // pred_check_branch
        %210 = sbr.rel (%p208) target = $region44
      $region43: #{conv_block_forward.5} parent=39 // pred_region
        %p211 = scmp.lt.s32.totalorder %s15, 1
        %s212 = scalar_select %p211, %s15, 1
        %s213 = smul.addr %s212, 2
        %s214 = smul.addr %s213, 8
        %s215 = scalar_lea.vmem %s3, %s214
      $region44: #{conv_block_forward.5} parent=39 // pred_fallthru
        _
    $region40: #{conv_block_forward.5} parent=5 // pred_fallthru
      _
  $region6: #{conv_block_forward.5} parent=0 // loop_footer
    %s13 = sadd.s32 1, %s9
  $region7: #{conv_block_forward.5} parent=0 // loop_footer_branch
    %8 = sbr.rel target = $region3
  $region8: #{conv_block_forward.5} parent=0 // loop_exit
    _

// kernel: conv_block_forward.4
$region0: #{conv_block_forward.4}
  #allocation0 [shape = 'u32[]', space=smem, size = 0x4, offset = 0x4, fixed_abs, tag = 'smem constant byte address 0x4 - core index']
  #allocation1 [shape = 'u32[144,128]{1,0:T(1,128)}', space=vmem, size = 0x12000, scoped, tag = 'internal scratch']
  %s0 = inlined_call_operand.vmem [shape: f32[2,16,128], index: 0, kind: input, shape index: {}]
  %s1 = inlined_call_operand.vmem [shape: bf16[3,144,128], index: 1, kind: input, shape index: {}]
  %s2 = inlined_call_operand.vmem [shape: f32[1,128], index: 2, kind: input, shape index: {}]
  %s3 = inlined_call_operand.vmem [shape: f32[1,128], index: 3, kind: input, shape index: {}]
  %s4 = inlined_call_operand.vmem [shape: f32[2,16,128], index: 4, kind: output, shape index: {0}]
  %s5 = inlined_call_operand.vmem [shape: f32[2,2,128], index: 5, kind: output, shape index: {1}]
  %6 = xla_tuple %s4, %s5
  %s7 = sld [smem:[#allocation0]]
  $region57: #{conv_block_forward.4} parent=0
    _
  %s9 = ssub.s32 1, %s7
  %s10 = scalar_select 0, %s9, %s7
  loop: start=0, step=1, limit=4
  $region2: #{conv_block_forward.4} parent=0 // loop_pre_header
    _
  $region3: #{conv_block_forward.4} parent=0 // loop_header
    %s12 = sphi 0, %s16
    %p13 = scmp.ge.s32.totalorder %s12, 4
    %s22 = sphi 0, %s24
    %s25 = sphi 0, %s22
    %s26 = sphi 0, %s25
    %s42 = sphi 0, %s26
    %s46 = sphi 0, %s46
    %s48 = sphi 0, %s46
    %s49 = sphi 0, %s48
    %s63 = sphi 0, %s49
    %s67 = sphi 0, %s67
    %s69 = sphi 0, %s67
    %s70 = sphi 0, %s69
    %s84 = sphi 0, %s70
    %s88 = sphi 0, %s88
    %s90 = sphi 0, %s88
    %s91 = sphi 0, %s90
    %s105 = sphi 0, %s91
    %s111 = sphi 0, %s113
    %s114 = sphi 0, %s111
    %s115 = sphi 0, %s114
    %s131 = sphi 0, %s115
    %s137 = sphi 0, %s139
    %s140 = sphi 0, %s137
    %s141 = sphi 0, %s140
    %s157 = sphi 0, %s141
  $region4: #{conv_block_forward.4} parent=0 // loop_header_branch
    %15 = sbr.rel (%p13) target = $region8
  $region5: #{conv_block_forward.4} parent=0 // loop_body
    %s17 = ssub.s32 %s12, 1
    %s18 = ssub.s32 %s12, 2
    %s19 = sadd.s32 %s12, 1
    %s20 = ssub.s32 %s12, %s19
    %p21 = scmp.eq.s32.totalorder %s20, 0
    %s23 = sadd.s32 %s22, 1
    %s24 = scalar_select %p21, %s22, %s23
    %p27 = pneg %p21
    %p28 = scmp.eq.s32.totalorder %s12, 1
    %p29 = por %p27, %p28
    %p30 = scmp.ne.s32.totalorder %s22, %s25
    %p31 = scmp.eq.s32.totalorder %s12, 0
    %p32 = por %p30, %p31
    %p33 = scmp.ne.s32.totalorder %s22, %s25
    %p34 = scmp.eq.s32.totalorder %s17, 1
    %p35 = por %p33, %p34
    %p36 = scmp.ne.s32.totalorder %s25, %s26
    %p37 = scmp.eq.s32.totalorder %s17, 0
    %p38 = por %p36, %p37
    %p39 = scmp.ne.s32.totalorder %s25, %s26
    %p40 = scmp.eq.s32.totalorder %s18, 1
    %p41 = por %p39, %p40
    %p43 = scmp.ne.s32.totalorder %s26, %s42
    %p44 = scmp.eq.s32.totalorder %s18, 0
    %p45 = por %p43, %p44
    %s47 = sadd.s32 %s46, 1
    %p50 = scmp.eq.s32.totalorder %s12, 1
    %p51 = scmp.ne.s32.totalorder %s46, %s48
    %p52 = scmp.eq.s32.totalorder %s12, 0
    %p53 = por %p51, %p52
    %p54 = scmp.ne.s32.totalorder %s46, %s48
    %p55 = scmp.eq.s32.totalorder %s17, 1
    %p56 = por %p54, %p55
    %p57 = scmp.ne.s32.totalorder %s48, %s49
    %p58 = scmp.eq.s32.totalorder %s17, 0
    %p59 = por %p57, %p58
    %p60 = scmp.ne.s32.totalorder %s48, %s49
    %p61 = scmp.eq.s32.totalorder %s18, 1
    %p62 = por %p60, %p61
    %p64 = scmp.ne.s32.totalorder %s49, %s63
    %p65 = scmp.eq.s32.totalorder %s18, 0
    %p66 = por %p64, %p65
    %s68 = sadd.s32 %s67, 1
    %p71 = scmp.eq.s32.totalorder %s12, 1
    %p72 = scmp.ne.s32.totalorder %s67, %s69
    %p73 = scmp.eq.s32.totalorder %s12, 0
    %p74 = por %p72, %p73
    %p75 = scmp.ne.s32.totalorder %s67, %s69
    %p76 = scmp.eq.s32.totalorder %s17, 1
    %p77 = por %p75, %p76
    %p78 = scmp.ne.s32.totalorder %s69, %s70
    %p79 = scmp.eq.s32.totalorder %s17, 0
    %p80 = por %p78, %p79
    %p81 = scmp.ne.s32.totalorder %s69, %s70
    %p82 = scmp.eq.s32.totalorder %s18, 1
    %p83 = por %p81, %p82
    %p85 = scmp.ne.s32.totalorder %s70, %s84
    %p86 = scmp.eq.s32.totalorder %s18, 0
    %p87 = por %p85, %p86
    %s89 = sadd.s32 %s88, 1
    %p92 = scmp.eq.s32.totalorder %s12, 1
    %p93 = scmp.ne.s32.totalorder %s88, %s90
    %p94 = scmp.eq.s32.totalorder %s12, 0
    %p95 = por %p93, %p94
    %p96 = scmp.ne.s32.totalorder %s88, %s90
    %p97 = scmp.eq.s32.totalorder %s17, 1
    %p98 = por %p96, %p97
    %p99 = scmp.ne.s32.totalorder %s90, %s91
    %p100 = scmp.eq.s32.totalorder %s17, 0
    %p101 = por %p99, %p100
    %p102 = scmp.ne.s32.totalorder %s90, %s91
    %p103 = scmp.eq.s32.totalorder %s18, 1
    %p104 = por %p102, %p103
    %p106 = scmp.ne.s32.totalorder %s91, %s105
    %p107 = scmp.eq.s32.totalorder %s18, 0
    %p108 = por %p106, %p107
    %s109 = ssub.s32 %s12, %s19
    %p110 = scmp.eq.s32.totalorder %s109, 0
    %s112 = sadd.s32 %s111, 1
    %s113 = scalar_select %p110, %s111, %s112
    %p116 = pneg %p110
    %p117 = scmp.eq.s32.totalorder %s12, 1
    %p118 = por %p116, %p117
    %p119 = scmp.ne.s32.totalorder %s111, %s114
    %p120 = scmp.eq.s32.totalorder %s12, 0
    %p121 = por %p119, %p120
    %p122 = scmp.ne.s32.totalorder %s111, %s114
    %p123 = scmp.eq.s32.totalorder %s17, 1
    %p124 = por %p122, %p123
    %p125 = scmp.ne.s32.totalorder %s114, %s115
    %p126 = scmp.eq.s32.totalorder %s17, 0
    %p127 = por %p125, %p126
    %p128 = scmp.ne.s32.totalorder %s114, %s115
    %p129 = scmp.eq.s32.totalorder %s18, 1
    %p130 = por %p128, %p129
    %p132 = scmp.ne.s32.totalorder %s115, %s131
    %p133 = scmp.eq.s32.totalorder %s18, 0
    %p134 = por %p132, %p133
    %s135 = ssub.s32 %s12, %s19
    %p136 = scmp.eq.s32.totalorder %s135, 0
    %s138 = sadd.s32 %s137, 1
    %s139 = scalar_select %p136, %s137, %s138
    %p142 = pneg %p136
    %p143 = scmp.eq.s32.totalorder %s12, 1
    %p144 = por %p142, %p143
    %p145 = scmp.ne.s32.totalorder %s137, %s140
    %p146 = scmp.eq.s32.totalorder %s12, 0
    %p147 = por %p145, %p146
    %p148 = scmp.ne.s32.totalorder %s137, %s140
    %p149 = scmp.eq.s32.totalorder %s17, 1
    %p150 = por %p148, %p149
    %p151 = scmp.ne.s32.totalorder %s140, %s141
    %p152 = scmp.eq.s32.totalorder %s17, 0
    %p153 = por %p151, %p152
    %p154 = scmp.ne.s32.totalorder %s140, %s141
    %p155 = scmp.eq.s32.totalorder %s18, 1
    %p156 = por %p154, %p155
    %p158 = scmp.ne.s32.totalorder %s141, %s157
    %p159 = scmp.eq.s32.totalorder %s18, 0
    %p160 = por %p158, %p159
    %p161 = scmp.le.s32.totalorder 1, %s12
    %p162 = scmp.lt.s32.totalorder %s12, 3
    %p163 = pnand %p161, %p162
    %p164 = pneg %p163
    // Predicated region
    $region9: #{conv_block_forward.4} parent=5 // pred_check
      _
    $region10: #{conv_block_forward.4} parent=5 // pred_check_branch
      %166 = sbr.rel (%p163) target = $region12
    $region11: #{conv_block_forward.4} parent=5 // pred_region
      %s167 = ssub.s32 %s12, 1
      // Predicated region
      $region13: #{conv_block_forward.4} parent=11 // pred_check
        %p168 = pneg %p59
      $region14: #{conv_block_forward.4} parent=11 // pred_check_branch
        %170 = sbr.rel (%p168) target = $region16
      $region15: #{conv_block_forward.4} parent=11 // pred_region
        _
      $region16: #{conv_block_forward.4} parent=11 // pred_fallthru
        _
      // Predicated region
      $region17: #{conv_block_forward.4} parent=11 // pred_check
        %p171 = pneg %p80
      $region18: #{conv_block_forward.4} parent=11 // pred_check_branch
        %173 = sbr.rel (%p171) target = $region20
      $region19: #{conv_block_forward.4} parent=11 // pred_region
        _
      $region20: #{conv_block_forward.4} parent=11 // pred_fallthru
        _
      // Predicated region
      $region21: #{conv_block_forward.4} parent=11 // pred_check
        %p174 = pneg %p101
      $region22: #{conv_block_forward.4} parent=11 // pred_check_branch
        %176 = sbr.rel (%p174) target = $region24
      $region23: #{conv_block_forward.4} parent=11 // pred_region
        _
      $region24: #{conv_block_forward.4} parent=11 // pred_fallthru
        _
    $region12: #{conv_block_forward.4} parent=5 // pred_fallthru
      _
    %p177 = scmp.lt.s32.totalorder %s12, 2
    // Predicated region
    $region25: #{conv_block_forward.4} parent=5 // pred_check
      %p178 = pneg %p177
    $region26: #{conv_block_forward.4} parent=5 // pred_check_branch
      %180 = sbr.rel (%p178) target = $region28
    $region27: #{conv_block_forward.4} parent=5 // pred_region
      // Predicated region
      $region29: #{conv_block_forward.4} parent=27 // pred_check
        %p181 = pneg %p32
      $region30: #{conv_block_forward.4} parent=27 // pred_check_branch
        %183 = sbr.rel (%p181) target = $region32
      $region31: #{conv_block_forward.4} parent=27 // pred_region
        %p184 = scmp.lt.s32.totalorder %s12, 1
        %s185 = scalar_select %p184, %s12, 1
        %s186 = smul.addr %s185, 2
        %s187 = smul.addr %s186, 8
        %s188 = scalar_lea.vmem %s0, %s187
      $region32: #{conv_block_forward.4} parent=27 // pred_fallthru
        _
    $region28: #{conv_block_forward.4} parent=5 // pred_fallthru
      _
    %p189 = scmp.le.s32.totalorder 1, %s12
    %p190 = scmp.lt.s32.totalorder %s12, 3
    %p191 = pnand %p189, %p190
    %p192 = pneg %p191
    // Predicated region
    $region33: #{conv_block_forward.4} parent=5 // pred_check
      _
    $region34: #{conv_block_forward.4} parent=5 // pred_check_branch
      %194 = sbr.rel (%p191) target = $region36
    $region35: #{conv_block_forward.4} parent=5 // pred_region
      %s195 = ssub.s32 %s12, 1
      %p196 = scmp.lt.s32.totalorder %s17, 1
      %s197 = scalar_select %p196, %s17, 1
      %s198 = smul.addr %s197, 2
      %s199 = smul.addr %s198, 8
      %s200 = scalar_lea.vmem %s0, %s199
      %p201 = pneg %p38
      %p202 = pneg %p35
      %p203 = pneg %p59
      %p204 = pneg %p56
      %p205 = pneg %p80
      %p206 = pneg %p77
      %p207 = pneg %p101
      %p208 = pneg %p98
      %p209 = pneg %p127
      %p210 = pneg %p124
      %p211 = scmp.lt.s32.totalorder %s17, 1
      %s212 = scalar_select %p211, %s17, 1
      %s213 = smul.addr %s212, 2
      %s214 = smul.addr %s213, 8
      %s215 = scalar_lea.vmem %s4, %s214
      %p216 = pneg %p153
      %p217 = pneg %p150
      %p218 = scmp.lt.s32.totalorder %s17, 1
      %s219 = scalar_select %p218, %s17, 1
      %s220 = smul.addr %s219, 2
      %s221 = scalar_lea.vmem %s5, %s220
      %p222 = scmp.lt.s32.totalorder %s17, 1
      %s223 = scalar_select %p222, %s17, 1
      %s224 = smul.addr %s223, 2
      %s225 = smul.addr %s224, 8
      %s226 = scalar_lea.vmem %s0, %s225
      %p227 = scmp.lt.s32.totalorder %s17, 1
      %s228 = scalar_select %p227, %s17, 1
      %s229 = smul.addr %s228, 2
      %s230 = smul.addr %s229, 8
      %s231 = scalar_lea.vmem %s4, %s230
      %p232 = scmp.lt.s32.totalorder %s17, 1
      %s233 = scalar_select %p232, %s17, 1
      %s234 = smul.addr %s233, 2
      %s235 = scalar_lea.vmem %s5, %s234
      %v237 = vld [vmem:[%s226] sm:$0xff]
      %v238 = vld [vmem:[%s226 + $0x8] sm:$0xff]
      %v239 = vld [vmem:[%s2] sm:$0x1]
      %v241 = vlaneseq
      %v242 = vshrl.u32 %v241, 7
      %v243 = vsub.s32 0, %v242
      %v244 = vrot.slane %v239, %v243
      %v246 = vmul.f32 %v237, %v244
      %v247 = vmul.f32 %v238, %v244
      %v248 = vld [vmem:[%s3] sm:$0x1]
      %v250 = vlaneseq
      %v251 = vshrl.u32 %v250, 7
      %v252 = vsub.s32 0, %v251
      %v253 = vrot.slane %v248, %v252
      %v255 = vadd.f32 %v246, %v253
      %v256 = vadd.f32 %v247, %v253
      %v257 = vmax.f32 %v255, 0.0
      %v258 = vmax.f32 %v256, 0.0
      %261 = vrot.lane.b32.xlu0 %v257, 8
      %v262 = vpop.permute.xlu0 %261
      %263 = vrot.lane.b32.xlu0 %v258, 8
      %v264 = vpop.permute.xlu0 %263
      %vm267 = vcmask 64512
      %v268 = vsel %vm267, 0.0, %v262
      %v269 = vsel %vm267, 0.0, %v264
      %v270 = vsel %vm267, %v262, 0.0
      %v271 = vsel %vm267, %v264, 0.0
      %vm276 = vcmask 1040384
      %v277 = vrot.slane %v268, 7
      %v278 = vrot.slane %v270, 7
      %v279 = vrot.slane %v269, 7
      %v280 = vsel %vm276, %v277, %v279
      %v281 = vrot.slane %v271, 7
      %v282 = vsel %vm276, %v278, %v281
      %v289 = vsel %vm276, 0.0, %v277
      %v290 = vsel %vm276, 0.0, %v278
      %v291 = vsel %vm276, %v279, 0.0
      %v292 = vsel %vm276, %v281, 0.0
      %v293 = vpack.c.bf16 %v280, %v289
      %v294 = vpack.c.bf16 %v282, %v290
      %v295 = vpack.c.bf16 %v291, %v291
      %v296 = vpack.c.bf16 %v292, %v292
      %v297 = vld [vmem:[%s1] sm:$0xf]
      %v298 = vld [vmem:[%s1 + $0x4] sm:$0xf]
      %v299 = vld [vmem:[%s1 + $0x8] sm:$0xf]
      %v300 = vld [vmem:[%s1 + $0xc] sm:$0xf]
      %v301 = vld [vmem:[%s1 + $0x10] sm:$0xf]
      %v302 = vld [vmem:[%s1 + $0x14] sm:$0xf]
      %v303 = vld [vmem:[%s1 + $0x18] sm:$0xf]
      %v304 = vld [vmem:[%s1 + $0x1c] sm:$0xf]
      %v305 = vld [vmem:[%s1 + $0x20] sm:$0xf]
      %v306 = vld [vmem:[%s1 + $0x24] sm:$0xf]
      %v307 = vld [vmem:[%s1 + $0x28] sm:$0xf]
      %v308 = vld [vmem:[%s1 + $0x2c] sm:$0xf]
      %v309 = vld [vmem:[%s1 + $0x30] sm:$0xf]
      %v310 = vld [vmem:[%s1 + $0x34] sm:$0xf]
      %v311 = vld [vmem:[%s1 + $0x38] sm:$0xf]
      %v312 = vld [vmem:[%s1 + $0x3c] sm:$0xf]
      %v313 = vld [vmem:[%s1 + $0x40] sm:$0xf]
      %v314 = vld [vmem:[%s1 + $0x44] sm:$0xf]
      %s315 = scalar_lea.vmem %s1, 72
      %v316 = vld [vmem:[%s315] sm:$0xf]
      %v317 = vld [vmem:[%s315 + $0x4] sm:$0xf]
      %v318 = vld [vmem:[%s315 + $0x8] sm:$0xf]
      %v319 = vld [vmem:[%s315 + $0xc] sm:$0xf]
      %v320 = vld [vmem:[%s315 + $0x10] sm:$0xf]
      %v321 = vld [vmem:[%s315 + $0x14] sm:$0xf]
      %v322 = vld [vmem:[%s315 + $0x18] sm:$0xf]
      %v323 = vld [vmem:[%s315 + $0x1c] sm:$0xf]
      %v324 = vld [vmem:[%s315 + $0x20] sm:$0xf]
      %v325 = vld [vmem:[%s315 + $0x24] sm:$0xf]
      %v326 = vld [vmem:[%s315 + $0x28] sm:$0xf]
      %v327 = vld [vmem:[%s315 + $0x2c] sm:$0xf]
      %v328 = vld [vmem:[%s315 + $0x30] sm:$0xf]
      %v329 = vld [vmem:[%s315 + $0x34] sm:$0xf]
      %v330 = vld [vmem:[%s315 + $0x38] sm:$0xf]
      %v331 = vld [vmem:[%s315 + $0x3c] sm:$0xf]
      %v332 = vld [vmem:[%s315 + $0x40] sm:$0xf]
      %v333 = vld [vmem:[%s315 + $0x44] sm:$0xf]
      %vm334 = vsmask.f32 7424
      %v336 = vshrl.u32 %v293, 16
      %v338 = vshll.u32 %v293, 16
      %v340 = vrot.slane %v338, 1
      %v341 = vor.u32 %v336, %v340
      %v343 = vshll.u32 %v295, 16
      %v345 = vrot.slane %v343, 1
      %v346 = vsel %vm334, %v341, %v345
      %v348 = vshrl.u32 %v294, 16
      %v350 = vshll.u32 %v294, 16
      %v352 = vrot.slane %v350, 1
      %v353 = vor.u32 %v348, %v352
      %v355 = vshll.u32 %v296, 16
      %v357 = vrot.slane %v355, 1
      %v358 = vsel %vm334, %v353, %v357
      %v378 = vunpack.c.l.b16 %v316
      %v379 = vunpack.c.l.b16 %v317
      %v380 = vunpack.c.l.b16 %v318
      %v381 = vunpack.c.l.b16 %v319
      %v382 = vunpack.c.l.b16 %v320
      %v383 = vunpack.c.l.b16 %v321
      %v384 = vunpack.c.l.b16 %v322
      %v385 = vunpack.c.l.b16 %v323
      %v386 = vunpack.c.l.b16 %v324
      %v387 = vunpack.c.l.b16 %v325
      %v388 = vunpack.c.l.b16 %v326
      %v389 = vunpack.c.l.b16 %v327
      %v390 = vunpack.c.l.b16 %v328
      %v391 = vunpack.c.l.b16 %v329
      %v392 = vunpack.c.l.b16 %v330
      %v393 = vunpack.c.l.b16 %v331
      %v394 = vunpack.c.l.b16 %v332
      %v395 = vunpack.c.l.b16 %v333
      %v396 = vpack.c.b16 %v379, %v378
      %v397 = vpack.c.b16 %v381, %v380
      %v398 = vpack.c.b16 %v383, %v382
      %v399 = vpack.c.b16 %v385, %v384
      %v400 = vpack.c.b16 %v387, %v386
      %v401 = vpack.c.b16 %v389, %v388
      %v402 = vpack.c.b16 %v391, %v390
      %v403 = vpack.c.b16 %v393, %v392
      %v404 = vpack.c.b16 %v395, %v394
      %vm414 = vcmask 130048
      %v416 = vsel %vm414, %v358, 0
      %418 = vmatprep.subr.bf16.mxu0 0
      %419 = vmatpush1.bf16.msra.mxu0 %v396
      %420 = vmatprep.subr.bf16.mxu0 0
      %421 = vmatpush1.bf16.msra.mxu0 %v397
      %422 = vmatprep.subr.bf16.mxu0 0
      %423 = vmatpush1.bf16.msra.mxu0 %v398
      %424 = vmatprep.subr.bf16.mxu0 0
      %425 = vmatpush1.bf16.msra.mxu0 %v399
      %426 = vmatprep.subr.bf16.mxu0 0
      %427 = vmatpush1.bf16.msra.mxu0 %v400
      %428 = vmatprep.subr.bf16.mxu0 0
      %429 = vmatpush1.bf16.msra.mxu0 %v401
      %430 = vmatprep.subr.bf16.mxu0 0
      %431 = vmatpush1.bf16.msra.mxu0 %v402
      %432 = vmatprep.subr.bf16.mxu0 0
      %433 = vmatpush1.bf16.msra.mxu0 %v403
      %434 = vmatprep.subr.bf16.mxu0 0
      %435 = vmatpush1.bf16.msra.mxu0 %v404
      %436 = vmatprep.subr.bf16.mxu0 0
      %437 = vmatpush1.bf16.msra.mxu0 0
      %438 = vmatprep.subr.bf16.mxu0 0
      %439 = vmatpush1.bf16.msra.mxu0 0
      %440 = vmatprep.subr.bf16.mxu0 0
      %441 = vmatpush1.bf16.msra.mxu0 0
      %442 = vmatprep.subr.bf16.mxu0 0
      %443 = vmatpush1.bf16.msra.mxu0 0
      %444 = vmatprep.subr.bf16.mxu0 0
      %445 = vmatpush1.bf16.msra.mxu0 0
      %446 = vmatprep.subr.bf16.mxu0 0
      %447 = vmatpush1.bf16.msra.mxu0 0
      %448 = vmatprep.subr.bf16.mxu0 0
      %449 = vmatpush1.bf16.msra.mxu0 0
      %450 = vmatprep.mubr.bf16.mxu0 %v416
      %451 = vmatmul.mubr.bf16.gmra.mrb[0].mxu0 %v346
      %v452 = vpop.f32.mrb[0].mxu0
      %v453 = vadd.f32 0.0, %v452
      %v454 = vpop.f32.mrb[0].mxu0
      %v455 = vpop.f32.mrb[0].mxu0
      %v456 = vadd.f32 0.0, %v455
      %v457 = vpop.f32.mrb[0].mxu0
      %458 = vdwg.mxu0
      %v477 = vunpack.c.l.b16 %v297
      %v478 = vunpack.c.l.b16 %v298
      %v479 = vunpack.c.l.b16 %v299
      %v480 = vunpack.c.l.b16 %v300
      %v481 = vunpack.c.l.b16 %v301
      %v482 = vunpack.c.l.b16 %v302
      %v483 = vunpack.c.l.b16 %v303
      %v484 = vunpack.c.l.b16 %v304
      %v485 = vunpack.c.l.b16 %v305
      %v486 = vunpack.c.l.b16 %v306
      %v487 = vunpack.c.l.b16 %v307
      %v488 = vunpack.c.l.b16 %v308
      %v489 = vunpack.c.l.b16 %v309
      %v490 = vunpack.c.l.b16 %v310
      %v491 = vunpack.c.l.b16 %v311
      %v492 = vunpack.c.l.b16 %v312
      %v493 = vunpack.c.l.b16 %v313
      %v494 = vunpack.c.l.b16 %v314
      %v495 = vpack.c.b16 %v478, %v477
      %v496 = vpack.c.b16 %v480, %v479
      %v497 = vpack.c.b16 %v482, %v481
      %v498 = vpack.c.b16 %v484, %v483
      %v499 = vpack.c.b16 %v486, %v485
      %v500 = vpack.c.b16 %v488, %v487
      %v501 = vpack.c.b16 %v490, %v489
      %v502 = vpack.c.b16 %v492, %v491
      %v503 = vpack.c.b16 %v494, %v493
      %v513 = vsel %vm414, %v294, 0
      %515 = vmatprep.subr.bf16.mxu0 0
      %516 = vmatpush1.bf16.msra.mxu0 %v495
      %517 = vmatprep.subr.bf16.mxu0 0
      %518 = vmatpush1.bf16.msra.mxu0 %v496
      %519 = vmatprep.subr.bf16.mxu0 0
      %520 = vmatpush1.bf16.msra.mxu0 %v497
      %521 = vmatprep.subr.bf16.mxu0 0
      %522 = vmatpush1.bf16.msra.mxu0 %v498
      %523 = vmatprep.subr.bf16.mxu0 0
      %524 = vmatpush1.bf16.msra.mxu0 %v499
      %525 = vmatprep.subr.bf16.mxu0 0
      %526 = vmatpush1.bf16.msra.mxu0 %v500
      %527 = vmatprep.subr.bf16.mxu0 0
      %528 = vmatpush1.bf16.msra.mxu0 %v501
      %529 = vmatprep.subr.bf16.mxu0 0
      %530 = vmatpush1.bf16.msra.mxu0 %v502
      %531 = vmatprep.subr.bf16.mxu0 0
      %532 = vmatpush1.bf16.msra.mxu0 %v503
      %533 = vmatprep.subr.bf16.mxu0 0
      %534 = vmatpush1.bf16.msra.mxu0 0
      %535 = vmatprep.subr.bf16.mxu0 0
      %536 = vmatpush1.bf16.msra.mxu0 0
      %537 = vmatprep.subr.bf16.mxu0 0
      %538 = vmatpush1.bf16.msra.mxu0 0
      %539 = vmatprep.subr.bf16.mxu0 0
      %540 = vmatpush1.bf16.msra.mxu0 0
      %541 = vmatprep.subr.bf16.mxu0 0
      %542 = vmatpush1.bf16.msra.mxu0 0
      %543 = vmatprep.subr.bf16.mxu0 0
      %544 = vmatpush1.bf16.msra.mxu0 0
      %545 = vmatprep.subr.bf16.mxu0 0
      %546 = vmatpush1.bf16.msra.mxu0 0
      %547 = vmatprep.mubr.bf16.mxu0 %v513
      %548 = vmatmul.mubr.bf16.gmra.mrb[0].mxu0 %v293
      %v549 = vpop.f32.mrb[0].mxu0
      %v550 = vadd.f32 %v453, %v549
      %v551 = vpop.f32.mrb[0].mxu0
      %v552 = vpop.f32.mrb[0].mxu0
      %v553 = vadd.f32 %v456, %v552
      %v554 = vpop.f32.mrb[0].mxu0
      %555 = vdwg.mxu0
      %s556 = scalar_lea.vmem %s1, 144
      %v557 = vld [vmem:[%s556] sm:$0xf]
      %v558 = vld [vmem:[%s556 + $0x4] sm:$0xf]
      %v559 = vld [vmem:[%s556 + $0x8] sm:$0xf]
      %v560 = vld [vmem:[%s556 + $0xc] sm:$0xf]
      %v561 = vld [vmem:[%s556 + $0x10] sm:$0xf]
      %v562 = vld [vmem:[%s556 + $0x14] sm:$0xf]
      %v563 = vld [vmem:[%s556 + $0x18] sm:$0xf]
      %v564 = vld [vmem:[%s556 + $0x1c] sm:$0xf]
      %v565 = vld [vmem:[%s556 + $0x20] sm:$0xf]
      %v566 = vld [vmem:[%s556 + $0x24] sm:$0xf]
      %v567 = vld [vmem:[%s556 + $0x28] sm:$0xf]
      %v568 = vld [vmem:[%s556 + $0x2c] sm:$0xf]
      %v569 = vld [vmem:[%s556 + $0x30] sm:$0xf]
      %v570 = vld [vmem:[%s556 + $0x34] sm:$0xf]
      %v571 = vld [vmem:[%s556 + $0x38] sm:$0xf]
      %v572 = vld [vmem:[%s556 + $0x3c] sm:$0xf]
      %v573 = vld [vmem:[%s556 + $0x40] sm:$0xf]
      %v574 = vld [vmem:[%s556 + $0x44] sm:$0xf]
      %vm579 = vcmask 1046528
      %v580 = vrot.slane %v293, 1
      %v581 = vrot.slane %v295, 1
      %v582 = vsel %vm579, %v580, %v581
      %v583 = vrot.slane %v294, 1
      %v584 = vrot.slane %v296, 1
      %v585 = vsel %vm579, %v583, %v584
      %v605 = vunpack.c.l.b16 %v557
      %v606 = vunpack.c.l.b16 %v558
      %v607 = vunpack.c.l.b16 %v559
      %v608 = vunpack.c.l.b16 %v560
      %v609 = vunpack.c.l.b16 %v561
      %v610 = vunpack.c.l.b16 %v562
      %v611 = vunpack.c.l.b16 %v563
      %v612 = vunpack.c.l.b16 %v564
      %v613 = vunpack.c.l.b16 %v565
      %v614 = vunpack.c.l.b16 %v566
      %v615 = vunpack.c.l.b16 %v567
      %v616 = vunpack.c.l.b16 %v568
      %v617 = vunpack.c.l.b16 %v569
      %v618 = vunpack.c.l.b16 %v570
      %v619 = vunpack.c.l.b16 %v571
      %v620 = vunpack.c.l.b16 %v572
      %v621 = vunpack.c.l.b16 %v573
      %v622 = vunpack.c.l.b16 %v574
      %v623 = vpack.c.b16 %v606, %v605
      %v624 = vpack.c.b16 %v608, %v607
      %v625 = vpack.c.b16 %v610, %v609
      %v626 = vpack.c.b16 %v612, %v611
      %v627 = vpack.c.b16 %v614, %v613
      %v628 = vpack.c.b16 %v616, %v615
      %v629 = vpack.c.b16 %v618, %v617
      %v630 = vpack.c.b16 %v620, %v619
      %v631 = vpack.c.b16 %v622, %v621
      %v642 = vsel %vm414, %v585, 0
      %644 = vmatprep.subr.bf16.mxu0 0
      %645 = vmatpush1.bf16.msra.mxu0 %v623
      %646 = vmatprep.subr.bf16.mxu0 0
      %647 = vmatpush1.bf16.msra.mxu0 %v624
      %648 = vmatprep.subr.bf16.mxu0 0
      %649 = vmatpush1.bf16.msra.mxu0 %v625
      %650 = vmatprep.subr.bf16.mxu0 0
      %651 = vmatpush1.bf16.msra.mxu0 %v626
      %652 = vmatprep.subr.bf16.mxu0 0
      %653 = vmatpush1.bf16.msra.mxu0 %v627
      %654 = vmatprep.subr.bf16.mxu0 0
      %655 = vmatpush1.bf16.msra.mxu0 %v628
      %656 = vmatprep.subr.bf16.mxu0 0
      %657 = vmatpush1.bf16.msra.mxu0 %v629
      %658 = vmatprep.subr.bf16.mxu0 0
      %659 = vmatpush1.bf16.msra.mxu0 %v630
      %660 = vmatprep.subr.bf16.mxu0 0
      %661 = vmatpush1.bf16.msra.mxu0 %v631
      %662 = vmatprep.subr.bf16.mxu0 0
      %663 = vmatpush1.bf16.msra.mxu0 0
      %664 = vmatprep.subr.bf16.mxu0 0
      %665 = vmatpush1.bf16.msra.mxu0 0
      %666 = vmatprep.subr.bf16.mxu0 0
      %667 = vmatpush1.bf16.msra.mxu0 0
      %668 = vmatprep.subr.bf16.mxu0 0
      %669 = vmatpush1.bf16.msra.mxu0 0
      %670 = vmatprep.subr.bf16.mxu0 0
      %671 = vmatpush1.bf16.msra.mxu0 0
      %672 = vmatprep.subr.bf16.mxu0 0
      %673 = vmatpush1.bf16.msra.mxu0 0
      %674 = vmatprep.subr.bf16.mxu0 0
      %675 = vmatpush1.bf16.msra.mxu0 0
      %676 = vmatprep.mubr.bf16.mxu0 %v642
      %677 = vmatmul.mubr.bf16.gmra.mrb[0].mxu0 %v582
      %v678 = vpop.f32.mrb[0].mxu0
      %v679 = vadd.f32 0.0, %v678
      %v680 = vpop.f32.mrb[0].mxu0
      %v681 = vpop.f32.mrb[0].mxu0
      %v682 = vadd.f32 0.0, %v681
      %v683 = vpop.f32.mrb[0].mxu0
      %684 = vdwg.mxu0
      %v685 = vadd.f32 %v550, %v679
      %v686 = vadd.f32 %v553, %v682
      %687 = vst [vmem:[%s231] sm:$0xff] %v685
      %688 = vst [vmem:[%s231 + $0x8] sm:$0xff] %v686
      %v689 = vadd.f32 %v685, %v686
      %v690 = vrot.slane %v689, 4
      %v691 = vadd.f32 %v689, %v690
      %v692 = vrot.slane %v691, 2
      %v693 = vadd.f32 %v691, %v692
      %v694 = vrot.slane %v693, 1
      %v695 = vadd.f32 %v693, %v694
      %v696 = vmul.f32 %v685, %v685
      %v697 = vmul.f32 %v686, %v686
      %v698 = vadd.f32 %v696, %v697
      %v699 = vrot.slane %v698, 4
      %v700 = vadd.f32 %v698, %v699
      %v701 = vrot.slane %v700, 2
      %v702 = vadd.f32 %v700, %v701
      %v703 = vrot.slane %v702, 1
      %v704 = vadd.f32 %v702, %v703
      %v705 = vsel %vm276, %v695, %v704
      %706 = vst [vmem:[%s235] sm:$0x3] %v705
      %p707 = scmp.lt.s32.totalorder %s17, 1
      %s708 = scalar_select %p707, %s17, 1
      %s709 = smul.addr %s708, 2
      %s710 = smul.addr %s709, 8
      %s711 = scalar_lea.vmem %s4, %s710
      %p712 = scmp.lt.s32.totalorder %s17, 1
      %s713 = scalar_select %p712, %s17, 1
      %s714 = smul.addr %s713, 2
      %s715 = scalar_lea.vmem %s5, %s714
      // Predicated region
      $region37: #{conv_block_forward.4} parent=35 // pred_check
        %p716 = pneg %p124
      $region38: #{conv_block_forward.4} parent=35 // pred_check_branch
        %718 = sbr.rel (%p716) target = $region40
      $region39: #{conv_block_forward.4} parent=35 // pred_region
        _
      $region40: #{conv_block_forward.4} parent=35 // pred_fallthru
        _
      // Predicated region
      $region41: #{conv_block_forward.4} parent=35 // pred_check
        %p719 = pneg %p150
      $region42: #{conv_block_forward.4} parent=35 // pred_check_branch
        %721 = sbr.rel (%p719) target = $region44
      $region43: #{conv_block_forward.4} parent=35 // pred_region
        _
      $region44: #{conv_block_forward.4} parent=35 // pred_fallthru
        _
    $region36: #{conv_block_forward.4} parent=5 // pred_fallthru
      _
    %p722 = scmp.le.s32.totalorder 2, %s12
    // Predicated region
    $region45: #{conv_block_forward.4} parent=5 // pred_check
      %p723 = pneg %p722
    $region46: #{conv_block_forward.4} parent=5 // pred_check_branch
      %725 = sbr.rel (%p723) target = $region48
    $region47: #{conv_block_forward.4} parent=5 // pred_region
      %s726 = ssub.s32 %s12, 2
      // Predicated region
      $region49: #{conv_block_forward.4} parent=47 // pred_check
        %p727 = pneg %p130
      $region50: #{conv_block_forward.4} parent=47 // pred_check_branch
        %729 = sbr.rel (%p727) target = $region52
      $region51: #{conv_block_forward.4} parent=47 // pred_region
        %p730 = scmp.lt.s32.totalorder %s18, 1
        %s731 = scalar_select %p730, %s18, 1
        %s732 = smul.addr %s731, 2
        %s733 = smul.addr %s732, 8
        %s734 = scalar_lea.vmem %s4, %s733
      $region52: #{conv_block_forward.4} parent=47 // pred_fallthru
        _
      // Predicated region
      $region53: #{conv_block_forward.4} parent=47 // pred_check
        %p735 = pneg %p156
      $region54: #{conv_block_forward.4} parent=47 // pred_check_branch
        %737 = sbr.rel (%p735) target = $region56
      $region55: #{conv_block_forward.4} parent=47 // pred_region
        %p738 = scmp.lt.s32.totalorder %s18, 1
        %s739 = scalar_select %p738, %s18, 1
        %s740 = smul.addr %s739, 2
        %s741 = scalar_lea.vmem %s5, %s740
      $region56: #{conv_block_forward.4} parent=47 // pred_fallthru
        _
    $region48: #{conv_block_forward.4} parent=5 // pred_fallthru
      _
  $region6: #{conv_block_forward.4} parent=0 // loop_footer
    %s16 = sadd.s32 1, %s12
  $region7: #{conv_block_forward.4} parent=0 // loop_footer_branch
    %11 = sbr.rel target = $region3
  $region8: #{conv_block_forward.4} parent=0 // loop_exit
    _

</llo_original>
